<compile_context>
chip_gen: v7x
topology: tpu7x:2x2x1
jax: 0.10.0
libtpu: 0.0.40
codegen_flags: <defaults>
</compile_context>

<pallas_src>
import math
import jax
import jax.numpy as jnp
from jax.experimental import pallas as pl
from jax.experimental.pallas import tpu as pltpu


_NEG_BIG = -1e30   # finite "-inf": exp() underflows to exactly 0.0 in f32


def _attn_kernel(x_ref, w1_ref, b1_ref, w2sel_ref, bias_ref, out_ref):
    # Blocks per grid step:
    #   x_ref     : [Bt*Lp, H]    bf16 (or input dtype), batch*seq flattened
    #   w1_ref    : [H, A*Hh]     all-action packed weights (resident)
    #   b1_ref    : [1, A*Hh]     f32 all-action packed bias
    #   w2sel_ref : [Bt, A*Hh]    f32, w2[a_b] in row b's action block, 0 else
    #   bias_ref  : [Bt, Lp]      f32, -1e30 at masked/padded lanes, 0 elsewhere
    #   out_ref   : [Bt, Lp]      f32 alpha (softmax over Lp)
    Bt, Lp = bias_ref.shape
    N = w1_ref.shape[1]

    # hidden for all actions: single full-width MXU matmul, f32 accumulation.
    h = jnp.dot(x_ref[...], w1_ref[...], preferred_element_type=jnp.float32)
    h = jnp.maximum(h + b1_ref[...], 0.0)                       # relu, [Bt*Lp, N]
    h = h.reshape(Bt, Lp, N)

    # Width-1 second matmul + per-row action select: VPU mul + XLU lane reduce.
    s = jnp.sum(h * w2sel_ref[...][:, None, :], axis=-1)        # [Bt, Lp]
    s = s + bias_ref[...]                                        # mask/pad bias

    # softmax over the lane (sequence) axis, f32 throughout.
    m = jnp.max(s, axis=-1, keepdims=True)                       # [Bt, 1]
    e = jnp.exp(s - m)                                           # [Bt, Lp]
    denom = jnp.sum(e, axis=-1, keepdims=True)                   # [Bt, 1]
    inv = pl.reciprocal(denom, approx=True)                      # EUP slot
    out_ref[...] = (e * inv).astype(out_ref.dtype)


def linear_seq_attn_action2(x, x_mask, actions, w1, b1, w2, b2, *,
                            block_b=None, compute_dtype=jnp.bfloat16):
    """Pallas implementation of LinearSeqAttnAction2.forward (drop_r=0).

    compute_dtype: dtype of the x / w1 MXU operands (bf16 halves HBM traffic of
    this memory-bound kernel); pass None to keep the input dtype (full f32).
    b2 is accepted for API parity but cancels exactly in the softmax.
    """
    del b2  # constant over the sequence dim -> cancels in softmax
    B, L, H = x.shape
    A, _, Hh = w1.shape
    N = A * Hh
    actions = actions.astype(jnp.int32)
    mxu_dtype = x.dtype if compute_dtype is None else compute_dtype

    # All-action packed parameters (w1 stays [A,H,Hh]-sized in HBM; no B-sized gather).
    w1_all = jnp.transpose(w1, (1, 0, 2)).reshape(H, N).astype(mxu_dtype)    # [H, A*Hh]
    b1_all = b1.reshape(1, N).astype(jnp.float32)                            # [1, A*Hh]

    # One-hot action select folded into w2: row b = w2[actions[b]] in its block.
    onehot = jax.nn.one_hot(actions, A, dtype=jnp.float32)                   # [B, A]
    w2sel = (onehot[:, :, None] * w2.reshape(A, Hh)[None].astype(jnp.float32))
    w2sel = w2sel.reshape(B, N)                                              # [B, A*Hh]

    # Additive score bias: finite -inf at masked positions, 0 elsewhere.
    bias = jnp.where(x_mask, _NEG_BIG, 0.0).astype(jnp.float32)              # [B, L]

    # --- tiling ---------------------------------------------------------------
    Lp = pl.cdiv(L, 128) * 128            # lane-dense scores / alpha / stores
    if block_b is None:
        if B <= 8:
            block_b = B                   # full-dim block: no padded-batch waste
        else:
            block_b = 8 if B < 64 else 16  # >=2 grid steps; amortize per-step cost
    Bt = block_b
    if Bt != B and Bt % 8 != 0:           # sublane alignment for (Bt, Lp) blocks
        Bt = pl.cdiv(Bt, 8) * 8
    Bp = pl.cdiv(B, Bt) * Bt

    xp = jnp.pad(x.astype(mxu_dtype), ((0, Bp - B), (0, Lp - L), (0, 0)))
    xp = xp.reshape(Bp * Lp, H)                                  # flat M axis
    w2p = jnp.pad(w2sel, ((0, Bp - B), (0, 0)))
    biasp = jnp.pad(bias, ((0, 0), (0, Lp - L)), constant_values=_NEG_BIG)
    biasp = jnp.pad(biasp, ((0, Bp - B), (0, 0)))                # padded rows sliced away

    # VMEM budget: raise the scoped limit only when the working set needs it.
    xbytes = jnp.dtype(mxu_dtype).itemsize
    vmem_est = (
        2 * Bt * Lp * H * xbytes          # x block (double-buffered)
        + 2 * H * N * xbytes              # w1_all
        + 2 * N * 4                       # b1_all
        + 2 * Bt * N * 4                  # w2 select
        + 4 * Bt * Lp * 4                 # bias + out (double-buffered)
        + 3 * Bt * Lp * N * 4             # h + elementwise temporaries (f32)
    )
    compiler_kwargs = dict(dimension_semantics=("parallel",))
    if vmem_est > 16 * 1024 * 1024:       # above the smallest (v5e) scoped default
        # NOTE: on v7x (64 MiB physical VMEM) prefer shrinking block_b / L-tiling
        # instead of pushing this much past ~48 MiB.
        compiler_kwargs["vmem_limit_bytes"] = min(int(vmem_est * 1.25),
                                                  112 * 1024 * 1024)

    out = pl.pallas_call(
        _attn_kernel,
        out_shape=jax.ShapeDtypeStruct((Bp, Lp), jnp.float32),
        grid_spec=pltpu.PrefetchScalarGridSpec(
            num_scalar_prefetch=0,
            grid=(Bp // Bt,),
            in_specs=[
                pl.BlockSpec((Bt * Lp, H), lambda b: (b, 0)),    # x (flattened)
                pl.BlockSpec((H, N), lambda b: (0, 0)),          # w1_all (resident)
                pl.BlockSpec((1, N), lambda b: (0, 0)),          # b1_all
                pl.BlockSpec((Bt, N), lambda b: (b, 0)),         # w2 select
                pl.BlockSpec((Bt, Lp), lambda b: (b, 0)),        # mask bias
            ],
            out_specs=pl.BlockSpec((Bt, Lp), lambda b: (b, 0)),
        ),
        compiler_params=pltpu.CompilerParams(**compiler_kwargs),
    )(xp, w1_all, b1_all, w2p, biasp)

    return out[:B, :L]


def _reference(x, x_mask, actions, w1, b1, w2, b2):
    """Pure-JAX f32 reference mirroring the PyTorch forward."""
    w1s = w1[actions]                     # [B, H, Hh]
    b1s = b1[actions]                     # [B, Hh]
    w2s = w2[actions]                     # [B, Hh, 1]
    b2s = b2[actions]                     # [B, 1]
    h = jax.nn.relu(jnp.einsum("blh,bhk->blk", x, w1s) + b1s[:, None, :])
    s = jnp.einsum("blk,bko->blo", h, w2s)[..., 0] + b2s          # [B, L]
    s = jnp.where(x_mask, -jnp.inf, s)
    return jax.nn.softmax(s, axis=-1)


if __name__ == "__main__":
    # Small shapes consistent with the module's forward:
    B, L, H, A = 2, 8, 32, 4
    Hh = H // 2

    key = jax.random.PRNGKey(0)
    k_x, k_w1, k_b1, k_w2, k_b2, k_a = jax.random.split(key, 6)

    # Parameter init mirroring reset_parameters(): uniform(-stdv, stdv),
    # stdv = 1/sqrt(input_size // 2).
    stdv = 1.0 / math.sqrt(Hh)
    w1 = jax.random.uniform(k_w1, (A, H, Hh), jnp.float32, -stdv, stdv)
    b1 = jax.random.uniform(k_b1, (A, Hh), jnp.float32, -stdv, stdv)
    w2 = jax.random.uniform(k_w2, (A, Hh, 1), jnp.float32, -stdv, stdv)
    b2 = jax.random.uniform(k_b2, (A, 1), jnp.float32, -stdv, stdv)

    # Inputs
    x = jax.random.normal(k_x, (B, L, H), jnp.float32)
    x_mask = jnp.zeros((B, L), dtype=bool).at[1, L - 2:].set(True)
    actions = jax.random.randint(k_a, (B,), 0, A, jnp.int32)

    alpha = linear_seq_attn_action2(x, x_mask, actions, w1, b1, w2, b2)
    alpha = jax.block_until_ready(alpha)

    ref = _reference(x, x_mask, actions, w1, b1, w2, b2)
    assert alpha.shape == (B, L)
    # bf16 MXU operands + EUP approximate reciprocal -> relaxed tolerance.
    assert jnp.allclose(alpha, ref, atol=2e-2, rtol=2e-2), (alpha, ref)
    # rows sum to ~1 (approx reciprocal)
    assert jnp.allclose(jnp.sum(alpha, axis=-1), jnp.ones((B,)), atol=5e-3)
    # masked positions get exactly zero weight (exp underflow at -1e30)
    assert float(jnp.max(jnp.where(x_mask, alpha, 0.0))) == 0.0

    print("KERNEL_OK")
</pallas_src>

<mosaic_0001>
module attributes {stable_mosaic.version = 11 : i64} {
  func.func @_attn_kernel(%arg0: i32, %arg1: memref<256x32xbf16, #tpu.memory_space<vmem>>, %arg2: memref<32x64xbf16, #tpu.memory_space<vmem>>, %arg3: memref<1x64xf32, #tpu.memory_space<vmem>>, %arg4: memref<2x64xf32, #tpu.memory_space<vmem>>, %arg5: memref<2x128xf32, #tpu.memory_space<vmem>>, %arg6: memref<2x128xf32, #tpu.memory_space<vmem>>) attributes {dimension_semantics = [#tpu.dimension_semantics<parallel>], iteration_bounds = array<i64: 1>, scalar_prefetch = 0 : i64, scratch_operands = 0 : i64, tpu.core_type = #tpu.core_type<tc>, window_params = [{transform_indices = @transform_0, window_bounds = array<i64: 256, 32>}, {pipeline_mode = #tpu.pipeline_mode<synchronous>, transform_indices = @transform_1, window_bounds = array<i64: 32, 64>}, {pipeline_mode = #tpu.pipeline_mode<synchronous>, transform_indices = @transform_2, window_bounds = array<i64: 1, 64>}, {transform_indices = @transform_3, window_bounds = array<i64: 2, 64>}, {transform_indices = @transform_4, window_bounds = array<i64: 2, 128>}, {transform_indices = @transform_5, window_bounds = array<i64: 2, 128>}]} {
    %c0 = arith.constant 0 : index
    %c0_0 = arith.constant 0 : index
    %0 = vector.load %arg1[%c0, %c0_0] : memref<256x32xbf16, #tpu.memory_space<vmem>>, vector<256x32xbf16>
    %c0_1 = arith.constant 0 : index
    %c0_2 = arith.constant 0 : index
    %1 = vector.load %arg2[%c0_1, %c0_2] : memref<32x64xbf16, #tpu.memory_space<vmem>>, vector<32x64xbf16>
    %cst = arith.constant dense<0.000000e+00> : vector<256x64xf32>
    %2 = tpu.matmul %0, %1, %cst {dimension_numbers = #tpu.dot_dimension_numbers<[1], [0], [0], [1], [0, 0, 1, 1], [], []>} : vector<256x32xbf16>, vector<32x64xbf16>, vector<256x64xf32> -> vector<256x64xf32>
    %c0_3 = arith.constant 0 : index
    %c0_4 = arith.constant 0 : index
    %3 = vector.load %arg3[%c0_3, %c0_4] : memref<1x64xf32, #tpu.memory_space<vmem>>, vector<1x64xf32>
    %4 = vector.broadcast %3 : vector<1x64xf32> to vector<256x64xf32>
    %5 = arith.addf %2, %4 : vector<256x64xf32>
    %cst_5 = arith.constant 0.000000e+00 : f32
    %6 = vector.broadcast %cst_5 : f32 to vector<256x64xf32>
    %7 = arith.maximumf %5, %6 : vector<256x64xf32>
    %8 = vector.shape_cast %7 : vector<256x64xf32> to vector<2x128x64xf32>
    %c0_6 = arith.constant 0 : index
    %c0_7 = arith.constant 0 : index
    %9 = vector.load %arg4[%c0_6, %c0_7] : memref<2x64xf32, #tpu.memory_space<vmem>>, vector<2x64xf32>
    %10 = vector.shape_cast %9 : vector<2x64xf32> to vector<2x1x64xf32>
    %11 = vector.broadcast %10 : vector<2x1x64xf32> to vector<2x128x64xf32>
    %12 = arith.mulf %8, %11 : vector<2x128x64xf32>
    %cst_8 = arith.constant dense<0.000000e+00> : vector<2x128xf32>
    %13 = vector.multi_reduction <add>, %12, %cst_8 [2] : vector<2x128x64xf32> to vector<2x128xf32>
    %c0_9 = arith.constant 0 : index
    %c0_10 = arith.constant 0 : index
    %14 = vector.load %arg5[%c0_9, %c0_10] : memref<2x128xf32, #tpu.memory_space<vmem>>, vector<2x128xf32>
    %15 = arith.addf %13, %14 : vector<2x128xf32>
    %cst_11 = arith.constant dense<0xFF800000> : vector<2xf32>
    %16 = vector.multi_reduction <maximumf>, %15, %cst_11 [1] : vector<2x128xf32> to vector<2xf32>
    %17 = vector.shape_cast %16 : vector<2xf32> to vector<2x1xf32>
    %18 = vector.broadcast %17 : vector<2x1xf32> to vector<2x128xf32>
    %19 = arith.subf %15, %18 : vector<2x128xf32>
    %20 = math.exp %19 : vector<2x128xf32>
    %cst_12 = arith.constant dense<0.000000e+00> : vector<2xf32>
    %21 = vector.multi_reduction <add>, %20, %cst_12 [1] : vector<2x128xf32> to vector<2xf32>
    %22 = vector.shape_cast %21 : vector<2xf32> to vector<2x1xf32>
    %23 = tpu.reciprocal %22 {approx = true} : vector<2x1xf32> -> vector<2x1xf32>
    %24 = vector.broadcast %23 : vector<2x1xf32> to vector<2x128xf32>
    %25 = arith.mulf %20, %24 : vector<2x128xf32>
    %c0_13 = arith.constant 0 : index
    %c0_14 = arith.constant 0 : index
    %26 = vector.load %arg6[%c0_13, %c0_14] : memref<2x128xf32, #tpu.memory_space<vmem>>, vector<2x128xf32>
    tpu.vector_store %arg6[%c0_13, %c0_14], %25 {strides = array<i32>} : memref<2x128xf32, #tpu.memory_space<vmem>>, vector<2x128xf32>,
    return
  }
  func.func @transform_0(%arg0: i32) -> (i32, i32) {
    %c0_i32 = arith.constant 0 : i32
    %c0_i32_0 = arith.constant 0 : i32
    return %arg0, %c0_i32 : i32, i32
  }
  func.func @transform_1(%arg0: i32) -> (i32, i32) {
    %c0_i32 = arith.constant 0 : i32
    %c0_i32_0 = arith.constant 0 : i32
    %c0_i32_1 = arith.constant 0 : i32
    return %c0_i32, %c0_i32_0 : i32, i32
  }
  func.func @transform_2(%arg0: i32) -> (i32, i32) {
    %c0_i32 = arith.constant 0 : i32
    %c0_i32_0 = arith.constant 0 : i32
    %c0_i32_1 = arith.constant 0 : i32
    return %c0_i32, %c0_i32_0 : i32, i32
  }
  func.func @transform_3(%arg0: i32) -> (i32, i32) {
    %c0_i32 = arith.constant 0 : i32
    %c0_i32_0 = arith.constant 0 : i32
    return %arg0, %c0_i32 : i32, i32
  }
  func.func @transform_4(%arg0: i32) -> (i32, i32) {
    %c0_i32 = arith.constant 0 : i32
    %c0_i32_0 = arith.constant 0 : i32
    return %arg0, %c0_i32 : i32, i32
  }
  func.func @transform_5(%arg0: i32) -> (i32, i32) {
    %c0_i32 = arith.constant 0 : i32
    %c0_i32_0 = arith.constant 0 : i32
    return %arg0, %c0_i32 : i32, i32
  }
}

</mosaic_0001>

<llo_original>
// kernel: tpu_custom_call.1
$region0: #{tpu_custom_call.1}
  #allocation0 [shape = 'u32[]', space=smem, size = 0x4, offset = 0x4, fixed_abs, tag = 'smem constant byte address 0x4 - core index']
  #allocation1 [shape = 'u32[144,128]{1,0:T(1,128)}', space=vmem, size = 0x12000, scoped, tag = 'internal scratch']
  %s0 = inlined_call_operand.vmem [shape: bf16[256,32], index: 0, kind: input, shape index: {}]
  %s1 = inlined_call_operand.vmem [shape: bf16[32,64], index: 1, kind: input, shape index: {}]
  %s2 = inlined_call_operand.vmem [shape: f32[1,64], index: 2, kind: input, shape index: {}]
  %s3 = inlined_call_operand.vmem [shape: f32[2,64], index: 3, kind: input, shape index: {}]
  %s4 = inlined_call_operand.vmem [shape: f32[2,128], index: 4, kind: input, shape index: {}]
  %s5 = inlined_call_operand.hbm [shape: f32[2,128], index: 5, kind: output, shape index: {}]
  %s6 = sld [smem:[#allocation0]]
  $region30: #{tpu_custom_call.1} parent=0
    _
  %s8 = ssub.s32 1, %s6
  %s9 = scalar_select 0, %s8, %s6
  $region1: #{tpu_custom_call.1} parent=0
    #allocation2 [shape = 'u8[1024]{0}', space=vmem, size = 0x400, scoped, tag = 'output window, operand 0, single buffered']
    #allocation3 [shape = 's32[1]{0}', space=sflag, size = 0x4, scoped, tag = 'scoped memory for tpu_custom_call.1']
    %10 = vsyncpa [#allocation3], 0
    // Predicated region
    $region2: #{tpu_custom_call.1} parent=1 // pred_check
      _
    $region3: #{tpu_custom_call.1} parent=1 // pred_check_branch
      %12 = sbr.rel (0) target = $region5
    $region4: #{tpu_custom_call.1} parent=1 // pred_region
      _
    $region5: #{tpu_custom_call.1} parent=1 // pred_fallthru
      _
    // Predicated region
    $region6: #{tpu_custom_call.1} parent=1 // pred_check
      _
    $region7: #{tpu_custom_call.1} parent=1 // pred_check_branch
      %14 = sbr.rel (0) target = $region9
    $region8: #{tpu_custom_call.1} parent=1 // pred_region
      _
    $region9: #{tpu_custom_call.1} parent=1 // pred_fallthru
      _
    // Predicated region
    $region10: #{tpu_custom_call.1} parent=1 // pred_check
      _
    $region11: #{tpu_custom_call.1} parent=1 // pred_check_branch
      %16 = sbr.rel (0) target = $region13
    $region12: #{tpu_custom_call.1} parent=1 // pred_region
      _
    $region13: #{tpu_custom_call.1} parent=1 // pred_fallthru
      _
    // Predicated region
    $region14: #{tpu_custom_call.1} parent=1 // pred_check
      _
    $region15: #{tpu_custom_call.1} parent=1 // pred_check_branch
      %18 = sbr.rel (0) target = $region17
    $region16: #{tpu_custom_call.1} parent=1 // pred_region
      _
    $region17: #{tpu_custom_call.1} parent=1 // pred_fallthru
      _
    // Predicated region
    $region18: #{tpu_custom_call.1} parent=1 // pred_check
      _
    $region19: #{tpu_custom_call.1} parent=1 // pred_check_branch
      %20 = sbr.rel (0) target = $region21
    $region20: #{tpu_custom_call.1} parent=1 // pred_region
      _
    $region21: #{tpu_custom_call.1} parent=1 // pred_fallthru
      _
    %v22 = vld [vmem:[%s0] sm:$0xf]
    %v23 = vld [vmem:[%s0 + $0x4] sm:$0xf]
    %v24 = vld [vmem:[%s0 + $0x8] sm:$0xf]
    %v25 = vld [vmem:[%s0 + $0xc] sm:$0xf]
    %v26 = vld [vmem:[%s0 + $0x10] sm:$0xf]
    %v27 = vld [vmem:[%s0 + $0x14] sm:$0xf]
    %v28 = vld [vmem:[%s0 + $0x18] sm:$0xf]
    %v29 = vld [vmem:[%s0 + $0x1c] sm:$0xf]
    %v30 = vld [vmem:[%s0 + $0x20] sm:$0xf]
    %v31 = vld [vmem:[%s0 + $0x24] sm:$0xf]
    %v32 = vld [vmem:[%s0 + $0x28] sm:$0xf]
    %v33 = vld [vmem:[%s0 + $0x2c] sm:$0xf]
    %v34 = vld [vmem:[%s0 + $0x30] sm:$0xf]
    %v35 = vld [vmem:[%s0 + $0x34] sm:$0xf]
    %v36 = vld [vmem:[%s0 + $0x38] sm:$0xf]
    %v37 = vld [vmem:[%s0 + $0x3c] sm:$0xf]
    %v38 = vld [vmem:[%s0 + $0x40] sm:$0xf]
    %v39 = vld [vmem:[%s0 + $0x44] sm:$0xf]
    %v40 = vld [vmem:[%s0 + $0x48] sm:$0xf]
    %v41 = vld [vmem:[%s0 + $0x4c] sm:$0xf]
    %v42 = vld [vmem:[%s0 + $0x50] sm:$0xf]
    %v43 = vld [vmem:[%s0 + $0x54] sm:$0xf]
    %v44 = vld [vmem:[%s0 + $0x58] sm:$0xf]
    %v45 = vld [vmem:[%s0 + $0x5c] sm:$0xf]
    %v46 = vld [vmem:[%s0 + $0x60] sm:$0xf]
    %v47 = vld [vmem:[%s0 + $0x64] sm:$0xf]
    %v48 = vld [vmem:[%s0 + $0x68] sm:$0xf]
    %v49 = vld [vmem:[%s0 + $0x6c] sm:$0xf]
    %v50 = vld [vmem:[%s0 + $0x70] sm:$0xf]
    %v51 = vld [vmem:[%s0 + $0x74] sm:$0xf]
    %v52 = vld [vmem:[%s0 + $0x78] sm:$0xf]
    %v53 = vld [vmem:[%s0 + $0x7c] sm:$0xf]
    %v54 = vld [vmem:[%s1] sm:$0xf]
    %v55 = vld [vmem:[%s1 + $0x4] sm:$0xf]
    %v56 = vld [vmem:[%s1 + $0x8] sm:$0xf]
    %v57 = vld [vmem:[%s1 + $0xc] sm:$0xf]
    %v58 = vld [vmem:[%s2] sm:$0x1]
    %v60 = vlaneseq
    %v61 = vshrl.u32 %v60, 7
    %v62 = vsub.s32 0, %v61
    %v63 = vrot.slane %v58, %v62
    %v97 = vunpack.c.l.b16 %v22
    %v98 = vunpack.c.l.b16 %v23
    %v99 = vunpack.c.l.b16 %v24
    %v100 = vunpack.c.l.b16 %v25
    %v101 = vunpack.c.l.b16 %v26
    %v102 = vunpack.c.l.b16 %v27
    %v103 = vunpack.c.l.b16 %v28
    %v104 = vunpack.c.l.b16 %v29
    %v105 = vunpack.c.l.b16 %v30
    %v106 = vunpack.c.l.b16 %v31
    %v107 = vunpack.c.l.b16 %v32
    %v108 = vunpack.c.l.b16 %v33
    %v109 = vunpack.c.l.b16 %v34
    %v110 = vunpack.c.l.b16 %v35
    %v111 = vunpack.c.l.b16 %v36
    %v112 = vunpack.c.l.b16 %v37
    %v113 = vunpack.c.l.b16 %v38
    %v114 = vunpack.c.l.b16 %v39
    %v115 = vunpack.c.l.b16 %v40
    %v116 = vunpack.c.l.b16 %v41
    %v117 = vunpack.c.l.b16 %v42
    %v118 = vunpack.c.l.b16 %v43
    %v119 = vunpack.c.l.b16 %v44
    %v120 = vunpack.c.l.b16 %v45
    %v121 = vunpack.c.l.b16 %v46
    %v122 = vunpack.c.l.b16 %v47
    %v123 = vunpack.c.l.b16 %v48
    %v124 = vunpack.c.l.b16 %v49
    %v125 = vunpack.c.l.b16 %v50
    %v126 = vunpack.c.l.b16 %v51
    %v127 = vunpack.c.l.b16 %v52
    %v128 = vunpack.c.l.b16 %v53
    %v129 = vpack.c.b16 %v98, %v97
    %v130 = vpack.c.b16 %v100, %v99
    %v131 = vpack.c.b16 %v102, %v101
    %v132 = vpack.c.b16 %v104, %v103
    %v133 = vpack.c.b16 %v106, %v105
    %v134 = vpack.c.b16 %v108, %v107
    %v135 = vpack.c.b16 %v110, %v109
    %v136 = vpack.c.b16 %v112, %v111
    %v137 = vpack.c.b16 %v114, %v113
    %v138 = vpack.c.b16 %v116, %v115
    %v139 = vpack.c.b16 %v118, %v117
    %v140 = vpack.c.b16 %v120, %v119
    %v141 = vpack.c.b16 %v122, %v121
    %v142 = vpack.c.b16 %v124, %v123
    %v143 = vpack.c.b16 %v126, %v125
    %v144 = vpack.c.b16 %v128, %v127
    %v149 = vunpack.c.l.b16 %v54
    %v150 = vunpack.c.l.b16 %v55
    %v151 = vunpack.c.l.b16 %v56
    %v152 = vunpack.c.l.b16 %v57
    %v153 = vpack.c.b16 %v150, %v149
    %v154 = vpack.c.b16 %v152, %v151
    %vm157 = vcmask 261120
    %v159 = vsel %vm157, %v129, 0
    %v162 = vsel %vm157, %v130, 0
    %v165 = vsel %vm157, %v131, 0
    %v168 = vsel %vm157, %v132, 0
    %v171 = vsel %vm157, %v133, 0
    %v174 = vsel %vm157, %v134, 0
    %v177 = vsel %vm157, %v135, 0
    %v180 = vsel %vm157, %v136, 0
    %v183 = vsel %vm157, %v137, 0
    %v186 = vsel %vm157, %v138, 0
    %v189 = vsel %vm157, %v139, 0
    %v192 = vsel %vm157, %v140, 0
    %v195 = vsel %vm157, %v141, 0
    %v198 = vsel %vm157, %v142, 0
    %v201 = vsel %vm157, %v143, 0
    %v204 = vsel %vm157, %v144, 0
    %206 = vmatprep.subr.bf16.mxu0 0
    %207 = vmatpush1.bf16.msra.mxu0 %v153
    %208 = vmatprep.subr.bf16.mxu0 0
    %209 = vmatpush1.bf16.msra.mxu0 %v154
    %210 = vmatprep.subr.bf16.mxu0 0
    %211 = vmatpush1.bf16.msra.mxu0 0
    %212 = vmatprep.subr.bf16.mxu0 0
    %213 = vmatpush1.bf16.msra.mxu0 0
    %214 = vmatprep.subr.bf16.mxu0 0
    %215 = vmatpush1.bf16.msra.mxu0 0
    %216 = vmatprep.subr.bf16.mxu0 0
    %217 = vmatpush1.bf16.msra.mxu0 0
    %218 = vmatprep.subr.bf16.mxu0 0
    %219 = vmatpush1.bf16.msra.mxu0 0
    %220 = vmatprep.subr.bf16.mxu0 0
    %221 = vmatpush1.bf16.msra.mxu0 0
    %222 = vmatprep.subr.bf16.mxu0 0
    %223 = vmatpush1.bf16.msra.mxu0 0
    %224 = vmatprep.subr.bf16.mxu0 0
    %225 = vmatpush1.bf16.msra.mxu0 0
    %226 = vmatprep.subr.bf16.mxu0 0
    %227 = vmatpush1.bf16.msra.mxu0 0
    %228 = vmatprep.subr.bf16.mxu0 0
    %229 = vmatpush1.bf16.msra.mxu0 0
    %230 = vmatprep.subr.bf16.mxu0 0
    %231 = vmatpush1.bf16.msra.mxu0 0
    %232 = vmatprep.subr.bf16.mxu0 0
    %233 = vmatpush1.bf16.msra.mxu0 0
    %234 = vmatprep.subr.bf16.mxu0 0
    %235 = vmatpush1.bf16.msra.mxu0 0
    %236 = vmatprep.subr.bf16.mxu0 0
    %237 = vmatpush1.bf16.msra.mxu0 0
    %238 = vmatprep.mubr.bf16.mxu0 0
    %239 = vmatmul.mubr.bf16.gmra.mrb[0].mxu0 %v159
    %v240 = vpop.f32.mrb[0].mxu0
    %v241 = vadd.f32 %v63, %v240
    %v242 = vpop.f32.mrb[0].mxu0
    %v243 = vpop.f32.mrb[0].mxu0
    %v244 = vadd.f32 %v63, %v243
    %v245 = vpop.f32.mrb[0].mxu0
    %246 = vmatprep.mubr.bf16.mxu0 0
    %247 = vmatmul.mubr.bf16.gmra.mrb[0].mxu0 %v162
    %v248 = vpop.f32.mrb[0].mxu0
    %v249 = vadd.f32 %v63, %v248
    %v250 = vpop.f32.mrb[0].mxu0
    %v251 = vpop.f32.mrb[0].mxu0
    %v252 = vadd.f32 %v63, %v251
    %v253 = vpop.f32.mrb[0].mxu0
    %254 = vmatprep.mubr.bf16.mxu0 0
    %255 = vmatmul.mubr.bf16.gmra.mrb[0].mxu0 %v165
    %v256 = vpop.f32.mrb[0].mxu0
    %v257 = vadd.f32 %v63, %v256
    %v258 = vpop.f32.mrb[0].mxu0
    %v259 = vpop.f32.mrb[0].mxu0
    %v260 = vadd.f32 %v63, %v259
    %v261 = vpop.f32.mrb[0].mxu0
    %262 = vmatprep.mubr.bf16.mxu0 0
    %263 = vmatmul.mubr.bf16.gmra.mrb[0].mxu0 %v168
    %v264 = vpop.f32.mrb[0].mxu0
    %v265 = vadd.f32 %v63, %v264
    %v266 = vpop.f32.mrb[0].mxu0
    %v267 = vpop.f32.mrb[0].mxu0
    %v268 = vadd.f32 %v63, %v267
    %v269 = vpop.f32.mrb[0].mxu0
    %270 = vmatprep.mubr.bf16.mxu0 0
    %271 = vmatmul.mubr.bf16.gmra.mrb[0].mxu0 %v171
    %v272 = vpop.f32.mrb[0].mxu0
    %v273 = vadd.f32 %v63, %v272
    %v274 = vpop.f32.mrb[0].mxu0
    %v275 = vpop.f32.mrb[0].mxu0
    %v276 = vadd.f32 %v63, %v275
    %v277 = vpop.f32.mrb[0].mxu0
    %278 = vmatprep.mubr.bf16.mxu0 0
    %279 = vmatmul.mubr.bf16.gmra.mrb[0].mxu0 %v174
    %v280 = vpop.f32.mrb[0].mxu0
    %v281 = vadd.f32 %v63, %v280
    %v282 = vpop.f32.mrb[0].mxu0
    %v283 = vpop.f32.mrb[0].mxu0
    %v284 = vadd.f32 %v63, %v283
    %v285 = vpop.f32.mrb[0].mxu0
    %286 = vmatprep.mubr.bf16.mxu0 0
    %287 = vmatmul.mubr.bf16.gmra.mrb[0].mxu0 %v177
    %v288 = vpop.f32.mrb[0].mxu0
    %v289 = vadd.f32 %v63, %v288
    %v290 = vpop.f32.mrb[0].mxu0
    %v291 = vpop.f32.mrb[0].mxu0
    %v292 = vadd.f32 %v63, %v291
    %v293 = vpop.f32.mrb[0].mxu0
    %294 = vmatprep.mubr.bf16.mxu0 0
    %295 = vmatmul.mubr.bf16.gmra.mrb[0].mxu0 %v180
    %v296 = vpop.f32.mrb[0].mxu0
    %v297 = vadd.f32 %v63, %v296
    %v298 = vpop.f32.mrb[0].mxu0
    %v299 = vpop.f32.mrb[0].mxu0
    %v300 = vadd.f32 %v63, %v299
    %v301 = vpop.f32.mrb[0].mxu0
    %302 = vmatprep.mubr.bf16.mxu0 0
    %303 = vmatmul.mubr.bf16.gmra.mrb[0].mxu0 %v183
    %v304 = vpop.f32.mrb[0].mxu0
    %v305 = vadd.f32 %v63, %v304
    %v306 = vpop.f32.mrb[0].mxu0
    %v307 = vpop.f32.mrb[0].mxu0
    %v308 = vadd.f32 %v63, %v307
    %v309 = vpop.f32.mrb[0].mxu0
    %310 = vmatprep.mubr.bf16.mxu0 0
    %311 = vmatmul.mubr.bf16.gmra.mrb[0].mxu0 %v186
    %v312 = vpop.f32.mrb[0].mxu0
    %v313 = vadd.f32 %v63, %v312
    %v314 = vpop.f32.mrb[0].mxu0
    %v315 = vpop.f32.mrb[0].mxu0
    %v316 = vadd.f32 %v63, %v315
    %v317 = vpop.f32.mrb[0].mxu0
    %318 = vmatprep.mubr.bf16.mxu0 0
    %319 = vmatmul.mubr.bf16.gmra.mrb[0].mxu0 %v189
    %v320 = vpop.f32.mrb[0].mxu0
    %v321 = vadd.f32 %v63, %v320
    %v322 = vpop.f32.mrb[0].mxu0
    %v323 = vpop.f32.mrb[0].mxu0
    %v324 = vadd.f32 %v63, %v323
    %v325 = vpop.f32.mrb[0].mxu0
    %326 = vmatprep.mubr.bf16.mxu0 0
    %327 = vmatmul.mubr.bf16.gmra.mrb[0].mxu0 %v192
    %v328 = vpop.f32.mrb[0].mxu0
    %v329 = vadd.f32 %v63, %v328
    %v330 = vpop.f32.mrb[0].mxu0
    %v331 = vpop.f32.mrb[0].mxu0
    %v332 = vadd.f32 %v63, %v331
    %v333 = vpop.f32.mrb[0].mxu0
    %334 = vmatprep.mubr.bf16.mxu0 0
    %335 = vmatmul.mubr.bf16.gmra.mrb[0].mxu0 %v195
    %v336 = vpop.f32.mrb[0].mxu0
    %v337 = vadd.f32 %v63, %v336
    %v338 = vpop.f32.mrb[0].mxu0
    %v339 = vpop.f32.mrb[0].mxu0
    %v340 = vadd.f32 %v63, %v339
    %v341 = vpop.f32.mrb[0].mxu0
    %342 = vmatprep.mubr.bf16.mxu0 0
    %343 = vmatmul.mubr.bf16.gmra.mrb[0].mxu0 %v198
    %v344 = vpop.f32.mrb[0].mxu0
    %v345 = vadd.f32 %v63, %v344
    %v346 = vpop.f32.mrb[0].mxu0
    %v347 = vpop.f32.mrb[0].mxu0
    %v348 = vadd.f32 %v63, %v347
    %v349 = vpop.f32.mrb[0].mxu0
    %350 = vmatprep.mubr.bf16.mxu0 0
    %351 = vmatmul.mubr.bf16.gmra.mrb[0].mxu0 %v201
    %v352 = vpop.f32.mrb[0].mxu0
    %v353 = vadd.f32 %v63, %v352
    %v354 = vpop.f32.mrb[0].mxu0
    %v355 = vpop.f32.mrb[0].mxu0
    %v356 = vadd.f32 %v63, %v355
    %v357 = vpop.f32.mrb[0].mxu0
    %358 = vmatprep.mubr.bf16.mxu0 0
    %359 = vmatmul.mubr.bf16.gmra.mrb[0].mxu0 %v204
    %v360 = vpop.f32.mrb[0].mxu0
    %v361 = vadd.f32 %v63, %v360
    %v362 = vpop.f32.mrb[0].mxu0
    %v363 = vpop.f32.mrb[0].mxu0
    %v364 = vadd.f32 %v63, %v363
    %v365 = vpop.f32.mrb[0].mxu0
    %366 = vdwg.mxu0
    %v367 = vmax.f32 %v241, 0.0
    %v368 = vmax.f32 %v244, 0.0
    %v369 = vmax.f32 %v249, 0.0
    %v370 = vmax.f32 %v252, 0.0
    %v371 = vmax.f32 %v257, 0.0
    %v372 = vmax.f32 %v260, 0.0
    %v373 = vmax.f32 %v265, 0.0
    %v374 = vmax.f32 %v268, 0.0
    %v375 = vmax.f32 %v273, 0.0
    %v376 = vmax.f32 %v276, 0.0
    %v377 = vmax.f32 %v281, 0.0
    %v378 = vmax.f32 %v284, 0.0
    %v379 = vmax.f32 %v289, 0.0
    %v380 = vmax.f32 %v292, 0.0
    %v381 = vmax.f32 %v297, 0.0
    %v382 = vmax.f32 %v300, 0.0
    %v383 = vmax.f32 %v305, 0.0
    %v384 = vmax.f32 %v308, 0.0
    %v385 = vmax.f32 %v313, 0.0
    %v386 = vmax.f32 %v316, 0.0
    %v387 = vmax.f32 %v321, 0.0
    %v388 = vmax.f32 %v324, 0.0
    %v389 = vmax.f32 %v329, 0.0
    %v390 = vmax.f32 %v332, 0.0
    %v391 = vmax.f32 %v337, 0.0
    %v392 = vmax.f32 %v340, 0.0
    %v393 = vmax.f32 %v345, 0.0
    %v394 = vmax.f32 %v348, 0.0
    %v395 = vmax.f32 %v353, 0.0
    %v396 = vmax.f32 %v356, 0.0
    %v397 = vmax.f32 %v361, 0.0
    %v398 = vmax.f32 %v364, 0.0
    %v399 = vld [vmem:[%s3] sm:$0x3]
    %v402 = vunpack.c.l.s4 1966171168
    %v403 = vunpack.c.0.s8 %v402
    %v404 = vlaneseq
    %v405 = vshrl.u32 %v404, 7
    %v406 = vsub.s32 %v403, %v405
    %v407 = vrot.slane %v399, %v406
    %v408 = vcombine.high %v407, %v407
    %v410 = vunpack.c.l.s4 1966171168
    %v411 = vunpack.c.0.s8 %v410
    %v412 = vlaneseq
    %v413 = vshrl.u32 %v412, 7
    %v414 = vsub.s32 %v411, %v413
    %v415 = vrot.slane %v407, %v414
    %v417 = vunpack.c.l.s4 1966171168
    %v418 = vunpack.c.0.s8 %v417
    %v419 = vlaneseq
    %v420 = vshrl.u32 %v419, 7
    %v421 = vsub.s32 %v418, %v420
    %v422 = vrot.slane %v408, %v421
    %v423 = vlaneseq
    %v424 = vshrl.u32 %v423, 7
    %v425 = vsub.s32 0, %v424
    %v426 = vrot.slane %v415, %v425
    %v427 = vlaneseq
    %v428 = vshrl.u32 %v427, 7
    %v429 = vsub.s32 0, %v428
    %v430 = vrot.slane %v422, %v429
    %v433 = vmul.f32 %v367, %v426
    %v434 = vmul.f32 %v368, %v426
    %v435 = vmul.f32 %v369, %v426
    %v436 = vmul.f32 %v370, %v426
    %v437 = vmul.f32 %v371, %v426
    %v438 = vmul.f32 %v372, %v426
    %v439 = vmul.f32 %v373, %v426
    %v440 = vmul.f32 %v374, %v426
    %v441 = vmul.f32 %v375, %v426
    %v442 = vmul.f32 %v376, %v426
    %v443 = vmul.f32 %v377, %v426
    %v444 = vmul.f32 %v378, %v426
    %v445 = vmul.f32 %v379, %v426
    %v446 = vmul.f32 %v380, %v426
    %v447 = vmul.f32 %v381, %v426
    %v448 = vmul.f32 %v382, %v426
    %v449 = vmul.f32 %v383, %v430
    %v450 = vmul.f32 %v384, %v430
    %v451 = vmul.f32 %v385, %v430
    %v452 = vmul.f32 %v386, %v430
    %v453 = vmul.f32 %v387, %v430
    %v454 = vmul.f32 %v388, %v430
    %v455 = vmul.f32 %v389, %v430
    %v456 = vmul.f32 %v390, %v430
    %v457 = vmul.f32 %v391, %v430
    %v458 = vmul.f32 %v392, %v430
    %v459 = vmul.f32 %v393, %v430
    %v460 = vmul.f32 %v394, %v430
    %v461 = vmul.f32 %v395, %v430
    %v462 = vmul.f32 %v396, %v430
    %v463 = vmul.f32 %v397, %v430
    %v464 = vmul.f32 %v398, %v430
    %vm465 = vcmask 523264
    %v466 = vsel %vm465, %v433, 0.0
    %467 = vadd.xlane.f32.xlu0 %v466
    %v468 = vpop.xlane.xlu0 %467
    %v469 = vsel %vm465, %v434, 0.0
    %470 = vadd.xlane.f32.xlu0 %v469
    %v471 = vpop.xlane.xlu0 %470
    %v472 = vsel %vm465, %v435, 0.0
    %473 = vadd.xlane.f32.xlu0 %v472
    %v474 = vpop.xlane.xlu0 %473
    %v475 = vsel %vm465, %v436, 0.0
    %476 = vadd.xlane.f32.xlu0 %v475
    %v477 = vpop.xlane.xlu0 %476
    %v478 = vsel %vm465, %v437, 0.0
    %479 = vadd.xlane.f32.xlu0 %v478
    %v480 = vpop.xlane.xlu0 %479
    %v481 = vsel %vm465, %v438, 0.0
    %482 = vadd.xlane.f32.xlu0 %v481
    %v483 = vpop.xlane.xlu0 %482
    %v484 = vsel %vm465, %v439, 0.0
    %485 = vadd.xlane.f32.xlu0 %v484
    %v486 = vpop.xlane.xlu0 %485
    %v487 = vsel %vm465, %v440, 0.0
    %488 = vadd.xlane.f32.xlu0 %v487
    %v489 = vpop.xlane.xlu0 %488
    %v490 = vsel %vm465, %v441, 0.0
    %491 = vadd.xlane.f32.xlu0 %v490
    %v492 = vpop.xlane.xlu0 %491
    %v493 = vsel %vm465, %v442, 0.0
    %494 = vadd.xlane.f32.xlu0 %v493
    %v495 = vpop.xlane.xlu0 %494
    %v496 = vsel %vm465, %v443, 0.0
    %497 = vadd.xlane.f32.xlu0 %v496
    %v498 = vpop.xlane.xlu0 %497
    %v499 = vsel %vm465, %v444, 0.0
    %500 = vadd.xlane.f32.xlu0 %v499
    %v501 = vpop.xlane.xlu0 %500
    %v502 = vsel %vm465, %v445, 0.0
    %503 = vadd.xlane.f32.xlu0 %v502
    %v504 = vpop.xlane.xlu0 %503
    %v505 = vsel %vm465, %v446, 0.0
    %506 = vadd.xlane.f32.xlu0 %v505
    %v507 = vpop.xlane.xlu0 %506
    %v508 = vsel %vm465, %v447, 0.0
    %509 = vadd.xlane.f32.xlu0 %v508
    %v510 = vpop.xlane.xlu0 %509
    %v511 = vsel %vm465, %v448, 0.0
    %512 = vadd.xlane.f32.xlu0 %v511
    %v513 = vpop.xlane.xlu0 %512
    %v514 = vsel %vm465, %v449, 0.0
    %515 = vadd.xlane.f32.xlu0 %v514
    %v516 = vpop.xlane.xlu0 %515
    %v517 = vsel %vm465, %v450, 0.0
    %518 = vadd.xlane.f32.xlu0 %v517
    %v519 = vpop.xlane.xlu0 %518
    %v520 = vsel %vm465, %v451, 0.0
    %521 = vadd.xlane.f32.xlu0 %v520
    %v522 = vpop.xlane.xlu0 %521
    %v523 = vsel %vm465, %v452, 0.0
    %524 = vadd.xlane.f32.xlu0 %v523
    %v525 = vpop.xlane.xlu0 %524
    %v526 = vsel %vm465, %v453, 0.0
    %527 = vadd.xlane.f32.xlu0 %v526
    %v528 = vpop.xlane.xlu0 %527
    %v529 = vsel %vm465, %v454, 0.0
    %530 = vadd.xlane.f32.xlu0 %v529
    %v531 = vpop.xlane.xlu0 %530
    %v532 = vsel %vm465, %v455, 0.0
    %533 = vadd.xlane.f32.xlu0 %v532
    %v534 = vpop.xlane.xlu0 %533
    %v535 = vsel %vm465, %v456, 0.0
    %536 = vadd.xlane.f32.xlu0 %v535
    %v537 = vpop.xlane.xlu0 %536
    %v538 = vsel %vm465, %v457, 0.0
    %539 = vadd.xlane.f32.xlu0 %v538
    %v540 = vpop.xlane.xlu0 %539
    %v541 = vsel %vm465, %v458, 0.0
    %542 = vadd.xlane.f32.xlu0 %v541
    %v543 = vpop.xlane.xlu0 %542
    %v544 = vsel %vm465, %v459, 0.0
    %545 = vadd.xlane.f32.xlu0 %v544
    %v546 = vpop.xlane.xlu0 %545
    %v547 = vsel %vm465, %v460, 0.0
    %548 = vadd.xlane.f32.xlu0 %v547
    %v549 = vpop.xlane.xlu0 %548
    %v550 = vsel %vm465, %v461, 0.0
    %551 = vadd.xlane.f32.xlu0 %v550
    %v552 = vpop.xlane.xlu0 %551
    %v553 = vsel %vm465, %v462, 0.0
    %554 = vadd.xlane.f32.xlu0 %v553
    %v555 = vpop.xlane.xlu0 %554
    %v556 = vsel %vm465, %v463, 0.0
    %557 = vadd.xlane.f32.xlu0 %v556
    %v558 = vpop.xlane.xlu0 %557
    %v559 = vsel %vm465, %v464, 0.0
    %560 = vadd.xlane.f32.xlu0 %v559
    %v561 = vpop.xlane.xlu0 %560
    %v562 = vld [vmem:[%s4] sm:$0x3]
    %v564 = vlaneseq
    %v565 = vshrl.u32 %v564, 7
    %v566 = vsub.s32 0, %v565
    %v567 = vrot.slane %v562, %v566
    %569 = vbcast.lane.b32.xlu0 %v567, 256
    %v570 = vpop.permute.xlu0 %569
    %s572 = sor.u32 256, 8
    %573 = vbcast.lane.b32.xlu0 %v567, %s572
    %v574 = vpop.permute.xlu0 %573
    %s576 = sor.u32 256, 16
    %577 = vbcast.lane.b32.xlu0 %v567, %s576
    %v578 = vpop.permute.xlu0 %577
    %s580 = sor.u32 256, 24
    %581 = vbcast.lane.b32.xlu0 %v567, %s580
    %v582 = vpop.permute.xlu0 %581
    %s584 = sor.u32 256, 32
    %585 = vbcast.lane.b32.xlu0 %v567, %s584
    %v586 = vpop.permute.xlu0 %585
    %s588 = sor.u32 256, 40
    %589 = vbcast.lane.b32.xlu0 %v567, %s588
    %v590 = vpop.permute.xlu0 %589
    %s592 = sor.u32 256, 48
    %593 = vbcast.lane.b32.xlu0 %v567, %s592
    %v594 = vpop.permute.xlu0 %593
    %s596 = sor.u32 256, 56
    %597 = vbcast.lane.b32.xlu0 %v567, %s596
    %v598 = vpop.permute.xlu0 %597
    %s600 = sor.u32 256, 64
    %601 = vbcast.lane.b32.xlu0 %v567, %s600
    %v602 = vpop.permute.xlu0 %601
    %s604 = sor.u32 256, 72
    %605 = vbcast.lane.b32.xlu0 %v567, %s604
    %v606 = vpop.permute.xlu0 %605
    %s608 = sor.u32 256, 80
    %609 = vbcast.lane.b32.xlu0 %v567, %s608
    %v610 = vpop.permute.xlu0 %609
    %s612 = sor.u32 256, 88
    %613 = vbcast.lane.b32.xlu0 %v567, %s612
    %v614 = vpop.permute.xlu0 %613
    %s616 = sor.u32 256, 96
    %617 = vbcast.lane.b32.xlu0 %v567, %s616
    %v618 = vpop.permute.xlu0 %617
    %s620 = sor.u32 256, 104
    %621 = vbcast.lane.b32.xlu0 %v567, %s620
    %v622 = vpop.permute.xlu0 %621
    %s624 = sor.u32 256, 112
    %625 = vbcast.lane.b32.xlu0 %v567, %s624
    %v626 = vpop.permute.xlu0 %625
    %s628 = sor.u32 256, 120
    %629 = vbcast.lane.b32.xlu0 %v567, %s628
    %v630 = vpop.permute.xlu0 %629
    %v631 = vlaneseq
    %v632 = vshrl.u32 %v631, 7
    %v633 = vsub.s32 1, %v632
    %v634 = vrot.slane %v562, %v633
    %636 = vbcast.lane.b32.xlu0 %v634, 256
    %v637 = vpop.permute.xlu0 %636
    %s639 = sor.u32 256, 8
    %640 = vbcast.lane.b32.xlu0 %v634, %s639
    %v641 = vpop.permute.xlu0 %640
    %s643 = sor.u32 256, 16
    %644 = vbcast.lane.b32.xlu0 %v634, %s643
    %v645 = vpop.permute.xlu0 %644
    %s647 = sor.u32 256, 24
    %648 = vbcast.lane.b32.xlu0 %v634, %s647
    %v649 = vpop.permute.xlu0 %648
    %s651 = sor.u32 256, 32
    %652 = vbcast.lane.b32.xlu0 %v634, %s651
    %v653 = vpop.permute.xlu0 %652
    %s655 = sor.u32 256, 40
    %656 = vbcast.lane.b32.xlu0 %v634, %s655
    %v657 = vpop.permute.xlu0 %656
    %s659 = sor.u32 256, 48
    %660 = vbcast.lane.b32.xlu0 %v634, %s659
    %v661 = vpop.permute.xlu0 %660
    %s663 = sor.u32 256, 56
    %664 = vbcast.lane.b32.xlu0 %v634, %s663
    %v665 = vpop.permute.xlu0 %664
    %s667 = sor.u32 256, 64
    %668 = vbcast.lane.b32.xlu0 %v634, %s667
    %v669 = vpop.permute.xlu0 %668
    %s671 = sor.u32 256, 72
    %672 = vbcast.lane.b32.xlu0 %v634, %s671
    %v673 = vpop.permute.xlu0 %672
    %s675 = sor.u32 256, 80
    %676 = vbcast.lane.b32.xlu0 %v634, %s675
    %v677 = vpop.permute.xlu0 %676
    %s679 = sor.u32 256, 88
    %680 = vbcast.lane.b32.xlu0 %v634, %s679
    %v681 = vpop.permute.xlu0 %680
    %s683 = sor.u32 256, 96
    %684 = vbcast.lane.b32.xlu0 %v634, %s683
    %v685 = vpop.permute.xlu0 %684
    %s687 = sor.u32 256, 104
    %688 = vbcast.lane.b32.xlu0 %v634, %s687
    %v689 = vpop.permute.xlu0 %688
    %s691 = sor.u32 256, 112
    %692 = vbcast.lane.b32.xlu0 %v634, %s691
    %v693 = vpop.permute.xlu0 %692
    %s695 = sor.u32 256, 120
    %696 = vbcast.lane.b32.xlu0 %v634, %s695
    %v697 = vpop.permute.xlu0 %696
    %v730 = vadd.f32 %v468, %v570
    %v731 = vadd.f32 %v471, %v574
    %v732 = vadd.f32 %v474, %v578
    %v733 = vadd.f32 %v477, %v582
    %v734 = vadd.f32 %v480, %v586
    %v735 = vadd.f32 %v483, %v590
    %v736 = vadd.f32 %v486, %v594
    %v737 = vadd.f32 %v489, %v598
    %v738 = vadd.f32 %v492, %v602
    %v739 = vadd.f32 %v495, %v606
    %v740 = vadd.f32 %v498, %v610
    %v741 = vadd.f32 %v501, %v614
    %v742 = vadd.f32 %v504, %v618
    %v743 = vadd.f32 %v507, %v622
    %v744 = vadd.f32 %v510, %v626
    %v745 = vadd.f32 %v513, %v630
    %v746 = vadd.f32 %v516, %v637
    %v747 = vadd.f32 %v519, %v641
    %v748 = vadd.f32 %v522, %v645
    %v749 = vadd.f32 %v525, %v649
    %v750 = vadd.f32 %v528, %v653
    %v751 = vadd.f32 %v531, %v657
    %v752 = vadd.f32 %v534, %v661
    %v753 = vadd.f32 %v537, %v665
    %v754 = vadd.f32 %v540, %v669
    %v755 = vadd.f32 %v543, %v673
    %v756 = vadd.f32 %v546, %v677
    %v757 = vadd.f32 %v549, %v681
    %v758 = vadd.f32 %v552, %v685
    %v759 = vadd.f32 %v555, %v689
    %v760 = vadd.f32 %v558, %v693
    %v761 = vadd.f32 %v561, %v697
    %794 = vset.pattern.permute.xlu0 0
    %795 = vperm.xlu0 %794, %v730
    %v796 = vpop.permute.xlu0 %795
    %797 = vset.pattern.permute.xlu0 0
    %798 = vperm.xlu0 %797, %v731
    %v799 = vpop.permute.xlu0 %798
    %800 = vset.pattern.permute.xlu0 0
    %801 = vperm.xlu0 %800, %v732
    %v802 = vpop.permute.xlu0 %801
    %803 = vset.pattern.permute.xlu0 0
    %804 = vperm.xlu0 %803, %v733
    %v805 = vpop.permute.xlu0 %804
    %806 = vset.pattern.permute.xlu0 0
    %807 = vperm.xlu0 %806, %v734
    %v808 = vpop.permute.xlu0 %807
    %809 = vset.pattern.permute.xlu0 0
    %810 = vperm.xlu0 %809, %v735
    %v811 = vpop.permute.xlu0 %810
    %812 = vset.pattern.permute.xlu0 0
    %813 = vperm.xlu0 %812, %v736
    %v814 = vpop.permute.xlu0 %813
    %815 = vset.pattern.permute.xlu0 0
    %816 = vperm.xlu0 %815, %v737
    %v817 = vpop.permute.xlu0 %816
    %818 = vset.pattern.permute.xlu0 0
    %819 = vperm.xlu0 %818, %v738
    %v820 = vpop.permute.xlu0 %819
    %821 = vset.pattern.permute.xlu0 0
    %822 = vperm.xlu0 %821, %v739
    %v823 = vpop.permute.xlu0 %822
    %824 = vset.pattern.permute.xlu0 0
    %825 = vperm.xlu0 %824, %v740
    %v826 = vpop.permute.xlu0 %825
    %827 = vset.pattern.permute.xlu0 0
    %828 = vperm.xlu0 %827, %v741
    %v829 = vpop.permute.xlu0 %828
    %830 = vset.pattern.permute.xlu0 0
    %831 = vperm.xlu0 %830, %v742
    %v832 = vpop.permute.xlu0 %831
    %833 = vset.pattern.permute.xlu0 0
    %834 = vperm.xlu0 %833, %v743
    %v835 = vpop.permute.xlu0 %834
    %836 = vset.pattern.permute.xlu0 0
    %837 = vperm.xlu0 %836, %v744
    %v838 = vpop.permute.xlu0 %837
    %839 = vset.pattern.permute.xlu0 0
    %840 = vperm.xlu0 %839, %v745
    %v841 = vpop.permute.xlu0 %840
    %842 = vset.pattern.permute.xlu0 0
    %843 = vperm.xlu0 %842, %v746
    %v844 = vpop.permute.xlu0 %843
    %845 = vset.pattern.permute.xlu0 0
    %846 = vperm.xlu0 %845, %v747
    %v847 = vpop.permute.xlu0 %846
    %848 = vset.pattern.permute.xlu0 0
    %849 = vperm.xlu0 %848, %v748
    %v850 = vpop.permute.xlu0 %849
    %851 = vset.pattern.permute.xlu0 0
    %852 = vperm.xlu0 %851, %v749
    %v853 = vpop.permute.xlu0 %852
    %854 = vset.pattern.permute.xlu0 0
    %855 = vperm.xlu0 %854, %v750
    %v856 = vpop.permute.xlu0 %855
    %857 = vset.pattern.permute.xlu0 0
    %858 = vperm.xlu0 %857, %v751
    %v859 = vpop.permute.xlu0 %858
    %860 = vset.pattern.permute.xlu0 0
    %861 = vperm.xlu0 %860, %v752
    %v862 = vpop.permute.xlu0 %861
    %863 = vset.pattern.permute.xlu0 0
    %864 = vperm.xlu0 %863, %v753
    %v865 = vpop.permute.xlu0 %864
    %866 = vset.pattern.permute.xlu0 0
    %867 = vperm.xlu0 %866, %v754
    %v868 = vpop.permute.xlu0 %867
    %869 = vset.pattern.permute.xlu0 0
    %870 = vperm.xlu0 %869, %v755
    %v871 = vpop.permute.xlu0 %870
    %872 = vset.pattern.permute.xlu0 0
    %873 = vperm.xlu0 %872, %v756
    %v874 = vpop.permute.xlu0 %873
    %875 = vset.pattern.permute.xlu0 0
    %876 = vperm.xlu0 %875, %v757
    %v877 = vpop.permute.xlu0 %876
    %878 = vset.pattern.permute.xlu0 0
    %879 = vperm.xlu0 %878, %v758
    %v880 = vpop.permute.xlu0 %879
    %881 = vset.pattern.permute.xlu0 0
    %882 = vperm.xlu0 %881, %v759
    %v883 = vpop.permute.xlu0 %882
    %884 = vset.pattern.permute.xlu0 0
    %885 = vperm.xlu0 %884, %v760
    %v886 = vpop.permute.xlu0 %885
    %887 = vset.pattern.permute.xlu0 0
    %888 = vperm.xlu0 %887, %v761
    %v889 = vpop.permute.xlu0 %888
    %v890 = vlaneseq
    %v891 = vand.u32 %v890, 127
    %v892 = vlaneseq
    %v893 = vshrl.u32 %v892, 7
    %v894 = vsub.s32 %v891, %v893
    %v895 = vrot.slane %v796, %v894
    %v896 = vadd.s32 %v891, 4294967288
    %v897 = vlaneseq
    %v898 = vshrl.u32 %v897, 7
    %v899 = vsub.s32 %v896, %v898
    %v900 = vrot.slane %v799, %v899
    %vm901 = vcmask 130112
    %v902 = vsel %vm901, %v900, %v895
    %v903 = vadd.s32 %v891, 4294967280
    %v904 = vlaneseq
    %v905 = vshrl.u32 %v904, 7
    %v906 = vsub.s32 %v903, %v905
    %v907 = vrot.slane %v802, %v906
    %vm908 = vcmask 195712
    %v909 = vsel %vm908, %v907, %v902
    %v910 = vadd.s32 %v891, 4294967272
    %v911 = vlaneseq
    %v912 = vshrl.u32 %v911, 7
    %v913 = vsub.s32 %v910, %v912
    %v914 = vrot.slane %v805, %v913
    %vm915 = vcmask 261312
    %v916 = vsel %vm915, %v914, %v909
    %v917 = vadd.s32 %v891, 4294967264
    %v918 = vlaneseq
    %v919 = vshrl.u32 %v918, 7
    %v920 = vsub.s32 %v917, %v919
    %v921 = vrot.slane %v808, %v920
    %vm922 = vcmask 326912
    %v923 = vsel %vm922, %v921, %v916
    %v924 = vadd.s32 %v891, 4294967256
    %v925 = vlaneseq
    %v926 = vshrl.u32 %v925, 7
    %v927 = vsub.s32 %v924, %v926
    %v928 = vrot.slane %v811, %v927
    %vm929 = vcmask 392512
    %v930 = vsel %vm929, %v928, %v923
    %v931 = vadd.s32 %v891, 4294967248
    %v932 = vlaneseq
    %v933 = vshrl.u32 %v932, 7
    %v934 = vsub.s32 %v931, %v933
    %v935 = vrot.slane %v814, %v934
    %vm936 = vcmask 458112
    %v937 = vsel %vm936, %v935, %v930
    %v938 = vadd.s32 %v891, 4294967240
    %v939 = vlaneseq
    %v940 = vshrl.u32 %v939, 7
    %v941 = vsub.s32 %v938, %v940
    %v942 = vrot.slane %v817, %v941
    %vm943 = vcmask 523712
    %v944 = vsel %vm943, %v942, %v937
    %v945 = vadd.s32 %v891, 4294967232
    %v946 = vlaneseq
    %v947 = vshrl.u32 %v946, 7
    %v948 = vsub.s32 %v945, %v947
    %v949 = vrot.slane %v820, %v948
    %vm950 = vcmask 589312
    %v951 = vsel %vm950, %v949, %v944
    %v952 = vadd.s32 %v891, 4294967224
    %v953 = vlaneseq
    %v954 = vshrl.u32 %v953, 7
    %v955 = vsub.s32 %v952, %v954
    %v956 = vrot.slane %v823, %v955
    %vm957 = vcmask 654912
    %v958 = vsel %vm957, %v956, %v951
    %v959 = vadd.s32 %v891, 4294967216
    %v960 = vlaneseq
    %v961 = vshrl.u32 %v960, 7
    %v962 = vsub.s32 %v959, %v961
    %v963 = vrot.slane %v826, %v962
    %vm964 = vcmask 720512
    %v965 = vsel %vm964, %v963, %v958
    %v966 = vadd.s32 %v891, 4294967208
    %v967 = vlaneseq
    %v968 = vshrl.u32 %v967, 7
    %v969 = vsub.s32 %v966, %v968
    %v970 = vrot.slane %v829, %v969
    %vm971 = vcmask 786112
    %v972 = vsel %vm971, %v970, %v965
    %v973 = vadd.s32 %v891, 4294967200
    %v974 = vlaneseq
    %v975 = vshrl.u32 %v974, 7
    %v976 = vsub.s32 %v973, %v975
    %v977 = vrot.slane %v832, %v976
    %vm978 = vcmask 851712
    %v979 = vsel %vm978, %v977, %v972
    %v980 = vadd.s32 %v891, 4294967192
    %v981 = vlaneseq
    %v982 = vshrl.u32 %v981, 7
    %v983 = vsub.s32 %v980, %v982
    %v984 = vrot.slane %v835, %v983
    %vm985 = vcmask 917312
    %v986 = vsel %vm985, %v984, %v979
    %v987 = vadd.s32 %v891, 4294967184
    %v988 = vlaneseq
    %v989 = vshrl.u32 %v988, 7
    %v990 = vsub.s32 %v987, %v989
    %v991 = vrot.slane %v838, %v990
    %vm992 = vcmask 982912
    %v993 = vsel %vm992, %v991, %v986
    %v994 = vadd.s32 %v891, 4294967176
    %v995 = vlaneseq
    %v996 = vshrl.u32 %v995, 7
    %v997 = vsub.s32 %v994, %v996
    %v998 = vrot.slane %v841, %v997
    %vm999 = vcmask 1048512
    %v1000 = vsel %vm999, %v998, %v993
    %v1001 = vlaneseq
    %v1002 = vshrl.u32 %v1001, 7
    %v1003 = vsub.s32 %v891, %v1002
    %v1004 = vrot.slane %v844, %v1003
    %v1005 = vlaneseq
    %v1006 = vshrl.u32 %v1005, 7
    %v1007 = vsub.s32 %v896, %v1006
    %v1008 = vrot.slane %v847, %v1007
    %v1009 = vsel %vm901, %v1008, %v1004
    %v1010 = vlaneseq
    %v1011 = vshrl.u32 %v1010, 7
    %v1012 = vsub.s32 %v903, %v1011
    %v1013 = vrot.slane %v850, %v1012
    %v1014 = vsel %vm908, %v1013, %v1009
    %v1015 = vlaneseq
    %v1016 = vshrl.u32 %v1015, 7
    %v1017 = vsub.s32 %v910, %v1016
    %v1018 = vrot.slane %v853, %v1017
    %v1019 = vsel %vm915, %v1018, %v1014
    %v1020 = vlaneseq
    %v1021 = vshrl.u32 %v1020, 7
    %v1022 = vsub.s32 %v917, %v1021
    %v1023 = vrot.slane %v856, %v1022
    %v1024 = vsel %vm922, %v1023, %v1019
    %v1025 = vlaneseq
    %v1026 = vshrl.u32 %v1025, 7
    %v1027 = vsub.s32 %v924, %v1026
    %v1028 = vrot.slane %v859, %v1027
    %v1029 = vsel %vm929, %v1028, %v1024
    %v1030 = vlaneseq
    %v1031 = vshrl.u32 %v1030, 7
    %v1032 = vsub.s32 %v931, %v1031
    %v1033 = vrot.slane %v862, %v1032
    %v1034 = vsel %vm936, %v1033, %v1029
    %v1035 = vlaneseq
    %v1036 = vshrl.u32 %v1035, 7
    %v1037 = vsub.s32 %v938, %v1036
    %v1038 = vrot.slane %v865, %v1037
    %v1039 = vsel %vm943, %v1038, %v1034
    %v1040 = vlaneseq
    %v1041 = vshrl.u32 %v1040, 7
    %v1042 = vsub.s32 %v945, %v1041
    %v1043 = vrot.slane %v868, %v1042
    %v1044 = vsel %vm950, %v1043, %v1039
    %v1045 = vlaneseq
    %v1046 = vshrl.u32 %v1045, 7
    %v1047 = vsub.s32 %v952, %v1046
    %v1048 = vrot.slane %v871, %v1047
    %v1049 = vsel %vm957, %v1048, %v1044
    %v1050 = vlaneseq
    %v1051 = vshrl.u32 %v1050, 7
    %v1052 = vsub.s32 %v959, %v1051
    %v1053 = vrot.slane %v874, %v1052
    %v1054 = vsel %vm964, %v1053, %v1049
    %v1055 = vlaneseq
    %v1056 = vshrl.u32 %v1055, 7
    %v1057 = vsub.s32 %v966, %v1056
    %v1058 = vrot.slane %v877, %v1057
    %v1059 = vsel %vm971, %v1058, %v1054
    %v1060 = vlaneseq
    %v1061 = vshrl.u32 %v1060, 7
    %v1062 = vsub.s32 %v973, %v1061
    %v1063 = vrot.slane %v880, %v1062
    %v1064 = vsel %vm978, %v1063, %v1059
    %v1065 = vlaneseq
    %v1066 = vshrl.u32 %v1065, 7
    %v1067 = vsub.s32 %v980, %v1066
    %v1068 = vrot.slane %v883, %v1067
    %v1069 = vsel %vm985, %v1068, %v1064
    %v1070 = vlaneseq
    %v1071 = vshrl.u32 %v1070, 7
    %v1072 = vsub.s32 %v987, %v1071
    %v1073 = vrot.slane %v886, %v1072
    %v1074 = vsel %vm992, %v1073, %v1069
    %v1075 = vlaneseq
    %v1076 = vshrl.u32 %v1075, 7
    %v1077 = vsub.s32 %v994, %v1076
    %v1078 = vrot.slane %v889, %v1077
    %v1079 = vsel %vm999, %v1078, %v1074
    %vm1080 = vcmask 1041409
    %v1081 = vsel %vm1080, %v1079, %v1000
    %vm1083 = vcmask 1041408
    %v1084 = vsel %vm1083, %v1081, -inf
    %1085 = vmax.xlane.f32.xlu0 %v1084
    %v1086 = vpop.xlane.xlu0 %1085
    %v1088 = vlaneseq
    %v1089 = vshrl.u32 %v1088, 7
    %v1090 = vsub.s32 0, %v1089
    %v1091 = vrot.slane %v1086, %v1090
    %v1092 = vlaneseq
    %v1093 = vshrl.u32 %v1092, 7
    %v1094 = vsub.s32 1, %v1093
    %v1095 = vrot.slane %v1086, %v1094
    %v1098 = vsub.f32 %v730, %v1091
    %v1099 = vsub.f32 %v731, %v1091
    %v1100 = vsub.f32 %v732, %v1091
    %v1101 = vsub.f32 %v733, %v1091
    %v1102 = vsub.f32 %v734, %v1091
    %v1103 = vsub.f32 %v735, %v1091
    %v1104 = vsub.f32 %v736, %v1091
    %v1105 = vsub.f32 %v737, %v1091
    %v1106 = vsub.f32 %v738, %v1091
    %v1107 = vsub.f32 %v739, %v1091
    %v1108 = vsub.f32 %v740, %v1091
    %v1109 = vsub.f32 %v741, %v1091
    %v1110 = vsub.f32 %v742, %v1091
    %v1111 = vsub.f32 %v743, %v1091
    %v1112 = vsub.f32 %v744, %v1091
    %v1113 = vsub.f32 %v745, %v1091
    %v1114 = vsub.f32 %v746, %v1095
    %v1115 = vsub.f32 %v747, %v1095
    %v1116 = vsub.f32 %v748, %v1095
    %v1117 = vsub.f32 %v749, %v1095
    %v1118 = vsub.f32 %v750, %v1095
    %v1119 = vsub.f32 %v751, %v1095
    %v1120 = vsub.f32 %v752, %v1095
    %v1121 = vsub.f32 %v753, %v1095
    %v1122 = vsub.f32 %v754, %v1095
    %v1123 = vsub.f32 %v755, %v1095
    %v1124 = vsub.f32 %v756, %v1095
    %v1125 = vsub.f32 %v757, %v1095
    %v1126 = vsub.f32 %v758, %v1095
    %v1127 = vsub.f32 %v759, %v1095
    %v1128 = vsub.f32 %v760, %v1095
    %v1129 = vsub.f32 %v761, %v1095
    %v1130 = vmul.f32 %v1098, 1.442695
    %v1131 = vpow.pop %v1130
    %v1132 = vmul.f32 %v1099, 1.442695
    %v1133 = vpow.pop %v1132
    %v1134 = vmul.f32 %v1100, 1.442695
    %v1135 = vpow.pop %v1134
    %v1136 = vmul.f32 %v1101, 1.442695
    %v1137 = vpow.pop %v1136
    %v1138 = vmul.f32 %v1102, 1.442695
    %v1139 = vpow.pop %v1138
    %v1140 = vmul.f32 %v1103, 1.442695
    %v1141 = vpow.pop %v1140
    %v1142 = vmul.f32 %v1104, 1.442695
    %v1143 = vpow.pop %v1142
    %v1144 = vmul.f32 %v1105, 1.442695
    %v1145 = vpow.pop %v1144
    %v1146 = vmul.f32 %v1106, 1.442695
    %v1147 = vpow.pop %v1146
    %v1148 = vmul.f32 %v1107, 1.442695
    %v1149 = vpow.pop %v1148
    %v1150 = vmul.f32 %v1108, 1.442695
    %v1151 = vpow.pop %v1150
    %v1152 = vmul.f32 %v1109, 1.442695
    %v1153 = vpow.pop %v1152
    %v1154 = vmul.f32 %v1110, 1.442695
    %v1155 = vpow.pop %v1154
    %v1156 = vmul.f32 %v1111, 1.442695
    %v1157 = vpow.pop %v1156
    %v1158 = vmul.f32 %v1112, 1.442695
    %v1159 = vpow.pop %v1158
    %v1160 = vmul.f32 %v1113, 1.442695
    %v1161 = vpow.pop %v1160
    %v1162 = vmul.f32 %v1114, 1.442695
    %v1163 = vpow.pop %v1162
    %v1164 = vmul.f32 %v1115, 1.442695
    %v1165 = vpow.pop %v1164
    %v1166 = vmul.f32 %v1116, 1.442695
    %v1167 = vpow.pop %v1166
    %v1168 = vmul.f32 %v1117, 1.442695
    %v1169 = vpow.pop %v1168
    %v1170 = vmul.f32 %v1118, 1.442695
    %v1171 = vpow.pop %v1170
    %v1172 = vmul.f32 %v1119, 1.442695
    %v1173 = vpow.pop %v1172
    %v1174 = vmul.f32 %v1120, 1.442695
    %v1175 = vpow.pop %v1174
    %v1176 = vmul.f32 %v1121, 1.442695
    %v1177 = vpow.pop %v1176
    %v1178 = vmul.f32 %v1122, 1.442695
    %v1179 = vpow.pop %v1178
    %v1180 = vmul.f32 %v1123, 1.442695
    %v1181 = vpow.pop %v1180
    %v1182 = vmul.f32 %v1124, 1.442695
    %v1183 = vpow.pop %v1182
    %v1184 = vmul.f32 %v1125, 1.442695
    %v1185 = vpow.pop %v1184
    %v1186 = vmul.f32 %v1126, 1.442695
    %v1187 = vpow.pop %v1186
    %v1188 = vmul.f32 %v1127, 1.442695
    %v1189 = vpow.pop %v1188
    %v1190 = vmul.f32 %v1128, 1.442695
    %v1191 = vpow.pop %v1190
    %v1192 = vmul.f32 %v1129, 1.442695
    %v1193 = vpow.pop %v1192
    %1226 = vset.pattern.permute.xlu0 0
    %1227 = vperm.xlu0 %1226, %v1131
    %v1228 = vpop.permute.xlu0 %1227
    %1229 = vset.pattern.permute.xlu0 0
    %1230 = vperm.xlu0 %1229, %v1133
    %v1231 = vpop.permute.xlu0 %1230
    %1232 = vset.pattern.permute.xlu0 0
    %1233 = vperm.xlu0 %1232, %v1135
    %v1234 = vpop.permute.xlu0 %1233
    %1235 = vset.pattern.permute.xlu0 0
    %1236 = vperm.xlu0 %1235, %v1137
    %v1237 = vpop.permute.xlu0 %1236
    %1238 = vset.pattern.permute.xlu0 0
    %1239 = vperm.xlu0 %1238, %v1139
    %v1240 = vpop.permute.xlu0 %1239
    %1241 = vset.pattern.permute.xlu0 0
    %1242 = vperm.xlu0 %1241, %v1141
    %v1243 = vpop.permute.xlu0 %1242
    %1244 = vset.pattern.permute.xlu0 0
    %1245 = vperm.xlu0 %1244, %v1143
    %v1246 = vpop.permute.xlu0 %1245
    %1247 = vset.pattern.permute.xlu0 0
    %1248 = vperm.xlu0 %1247, %v1145
    %v1249 = vpop.permute.xlu0 %1248
    %1250 = vset.pattern.permute.xlu0 0
    %1251 = vperm.xlu0 %1250, %v1147
    %v1252 = vpop.permute.xlu0 %1251
    %1253 = vset.pattern.permute.xlu0 0
    %1254 = vperm.xlu0 %1253, %v1149
    %v1255 = vpop.permute.xlu0 %1254
    %1256 = vset.pattern.permute.xlu0 0
    %1257 = vperm.xlu0 %1256, %v1151
    %v1258 = vpop.permute.xlu0 %1257
    %1259 = vset.pattern.permute.xlu0 0
    %1260 = vperm.xlu0 %1259, %v1153
    %v1261 = vpop.permute.xlu0 %1260
    %1262 = vset.pattern.permute.xlu0 0
    %1263 = vperm.xlu0 %1262, %v1155
    %v1264 = vpop.permute.xlu0 %1263
    %1265 = vset.pattern.permute.xlu0 0
    %1266 = vperm.xlu0 %1265, %v1157
    %v1267 = vpop.permute.xlu0 %1266
    %1268 = vset.pattern.permute.xlu0 0
    %1269 = vperm.xlu0 %1268, %v1159
    %v1270 = vpop.permute.xlu0 %1269
    %1271 = vset.pattern.permute.xlu0 0
    %1272 = vperm.xlu0 %1271, %v1161
    %v1273 = vpop.permute.xlu0 %1272
    %1274 = vset.pattern.permute.xlu0 0
    %1275 = vperm.xlu0 %1274, %v1163
    %v1276 = vpop.permute.xlu0 %1275
    %1277 = vset.pattern.permute.xlu0 0
    %1278 = vperm.xlu0 %1277, %v1165
    %v1279 = vpop.permute.xlu0 %1278
    %1280 = vset.pattern.permute.xlu0 0
    %1281 = vperm.xlu0 %1280, %v1167
    %v1282 = vpop.permute.xlu0 %1281
    %1283 = vset.pattern.permute.xlu0 0
    %1284 = vperm.xlu0 %1283, %v1169
    %v1285 = vpop.permute.xlu0 %1284
    %1286 = vset.pattern.permute.xlu0 0
    %1287 = vperm.xlu0 %1286, %v1171
    %v1288 = vpop.permute.xlu0 %1287
    %1289 = vset.pattern.permute.xlu0 0
    %1290 = vperm.xlu0 %1289, %v1173
    %v1291 = vpop.permute.xlu0 %1290
    %1292 = vset.pattern.permute.xlu0 0
    %1293 = vperm.xlu0 %1292, %v1175
    %v1294 = vpop.permute.xlu0 %1293
    %1295 = vset.pattern.permute.xlu0 0
    %1296 = vperm.xlu0 %1295, %v1177
    %v1297 = vpop.permute.xlu0 %1296
    %1298 = vset.pattern.permute.xlu0 0
    %1299 = vperm.xlu0 %1298, %v1179
    %v1300 = vpop.permute.xlu0 %1299
    %1301 = vset.pattern.permute.xlu0 0
    %1302 = vperm.xlu0 %1301, %v1181
    %v1303 = vpop.permute.xlu0 %1302
    %1304 = vset.pattern.permute.xlu0 0
    %1305 = vperm.xlu0 %1304, %v1183
    %v1306 = vpop.permute.xlu0 %1305
    %1307 = vset.pattern.permute.xlu0 0
    %1308 = vperm.xlu0 %1307, %v1185
    %v1309 = vpop.permute.xlu0 %1308
    %1310 = vset.pattern.permute.xlu0 0
    %1311 = vperm.xlu0 %1310, %v1187
    %v1312 = vpop.permute.xlu0 %1311
    %1313 = vset.pattern.permute.xlu0 0
    %1314 = vperm.xlu0 %1313, %v1189
    %v1315 = vpop.permute.xlu0 %1314
    %1316 = vset.pattern.permute.xlu0 0
    %1317 = vperm.xlu0 %1316, %v1191
    %v1318 = vpop.permute.xlu0 %1317
    %1319 = vset.pattern.permute.xlu0 0
    %1320 = vperm.xlu0 %1319, %v1193
    %v1321 = vpop.permute.xlu0 %1320
    %v1322 = vlaneseq
    %v1323 = vshrl.u32 %v1322, 7
    %v1324 = vsub.s32 %v891, %v1323
    %v1325 = vrot.slane %v1228, %v1324
    %v1326 = vlaneseq
    %v1327 = vshrl.u32 %v1326, 7
    %v1328 = vsub.s32 %v896, %v1327
    %v1329 = vrot.slane %v1231, %v1328
    %v1330 = vsel %vm901, %v1329, %v1325
    %v1331 = vlaneseq
    %v1332 = vshrl.u32 %v1331, 7
    %v1333 = vsub.s32 %v903, %v1332
    %v1334 = vrot.slane %v1234, %v1333
    %v1335 = vsel %vm908, %v1334, %v1330
    %v1336 = vlaneseq
    %v1337 = vshrl.u32 %v1336, 7
    %v1338 = vsub.s32 %v910, %v1337
    %v1339 = vrot.slane %v1237, %v1338
    %v1340 = vsel %vm915, %v1339, %v1335
    %v1341 = vlaneseq
    %v1342 = vshrl.u32 %v1341, 7
    %v1343 = vsub.s32 %v917, %v1342
    %v1344 = vrot.slane %v1240, %v1343
    %v1345 = vsel %vm922, %v1344, %v1340
    %v1346 = vlaneseq
    %v1347 = vshrl.u32 %v1346, 7
    %v1348 = vsub.s32 %v924, %v1347
    %v1349 = vrot.slane %v1243, %v1348
    %v1350 = vsel %vm929, %v1349, %v1345
    %v1351 = vlaneseq
    %v1352 = vshrl.u32 %v1351, 7
    %v1353 = vsub.s32 %v931, %v1352
    %v1354 = vrot.slane %v1246, %v1353
    %v1355 = vsel %vm936, %v1354, %v1350
    %v1356 = vlaneseq
    %v1357 = vshrl.u32 %v1356, 7
    %v1358 = vsub.s32 %v938, %v1357
    %v1359 = vrot.slane %v1249, %v1358
    %v1360 = vsel %vm943, %v1359, %v1355
    %v1361 = vlaneseq
    %v1362 = vshrl.u32 %v1361, 7
    %v1363 = vsub.s32 %v945, %v1362
    %v1364 = vrot.slane %v1252, %v1363
    %v1365 = vsel %vm950, %v1364, %v1360
    %v1366 = vlaneseq
    %v1367 = vshrl.u32 %v1366, 7
    %v1368 = vsub.s32 %v952, %v1367
    %v1369 = vrot.slane %v1255, %v1368
    %v1370 = vsel %vm957, %v1369, %v1365
    %v1371 = vlaneseq
    %v1372 = vshrl.u32 %v1371, 7
    %v1373 = vsub.s32 %v959, %v1372
    %v1374 = vrot.slane %v1258, %v1373
    %v1375 = vsel %vm964, %v1374, %v1370
    %v1376 = vlaneseq
    %v1377 = vshrl.u32 %v1376, 7
    %v1378 = vsub.s32 %v966, %v1377
    %v1379 = vrot.slane %v1261, %v1378
    %v1380 = vsel %vm971, %v1379, %v1375
    %v1381 = vlaneseq
    %v1382 = vshrl.u32 %v1381, 7
    %v1383 = vsub.s32 %v973, %v1382
    %v1384 = vrot.slane %v1264, %v1383
    %v1385 = vsel %vm978, %v1384, %v1380
    %v1386 = vlaneseq
    %v1387 = vshrl.u32 %v1386, 7
    %v1388 = vsub.s32 %v980, %v1387
    %v1389 = vrot.slane %v1267, %v1388
    %v1390 = vsel %vm985, %v1389, %v1385
    %v1391 = vlaneseq
    %v1392 = vshrl.u32 %v1391, 7
    %v1393 = vsub.s32 %v987, %v1392
    %v1394 = vrot.slane %v1270, %v1393
    %v1395 = vsel %vm992, %v1394, %v1390
    %v1396 = vlaneseq
    %v1397 = vshrl.u32 %v1396, 7
    %v1398 = vsub.s32 %v994, %v1397
    %v1399 = vrot.slane %v1273, %v1398
    %v1400 = vsel %vm999, %v1399, %v1395
    %v1401 = vlaneseq
    %v1402 = vshrl.u32 %v1401, 7
    %v1403 = vsub.s32 %v891, %v1402
    %v1404 = vrot.slane %v1276, %v1403
    %v1405 = vlaneseq
    %v1406 = vshrl.u32 %v1405, 7
    %v1407 = vsub.s32 %v896, %v1406
    %v1408 = vrot.slane %v1279, %v1407
    %v1409 = vsel %vm901, %v1408, %v1404
    %v1410 = vlaneseq
    %v1411 = vshrl.u32 %v1410, 7
    %v1412 = vsub.s32 %v903, %v1411
    %v1413 = vrot.slane %v1282, %v1412
    %v1414 = vsel %vm908, %v1413, %v1409
    %v1415 = vlaneseq
    %v1416 = vshrl.u32 %v1415, 7
    %v1417 = vsub.s32 %v910, %v1416
    %v1418 = vrot.slane %v1285, %v1417
    %v1419 = vsel %vm915, %v1418, %v1414
    %v1420 = vlaneseq
    %v1421 = vshrl.u32 %v1420, 7
    %v1422 = vsub.s32 %v917, %v1421
    %v1423 = vrot.slane %v1288, %v1422
    %v1424 = vsel %vm922, %v1423, %v1419
    %v1425 = vlaneseq
    %v1426 = vshrl.u32 %v1425, 7
    %v1427 = vsub.s32 %v924, %v1426
    %v1428 = vrot.slane %v1291, %v1427
    %v1429 = vsel %vm929, %v1428, %v1424
    %v1430 = vlaneseq
    %v1431 = vshrl.u32 %v1430, 7
    %v1432 = vsub.s32 %v931, %v1431
    %v1433 = vrot.slane %v1294, %v1432
    %v1434 = vsel %vm936, %v1433, %v1429
    %v1435 = vlaneseq
    %v1436 = vshrl.u32 %v1435, 7
    %v1437 = vsub.s32 %v938, %v1436
    %v1438 = vrot.slane %v1297, %v1437
    %v1439 = vsel %vm943, %v1438, %v1434
    %v1440 = vlaneseq
    %v1441 = vshrl.u32 %v1440, 7
    %v1442 = vsub.s32 %v945, %v1441
    %v1443 = vrot.slane %v1300, %v1442
    %v1444 = vsel %vm950, %v1443, %v1439
    %v1445 = vlaneseq
    %v1446 = vshrl.u32 %v1445, 7
    %v1447 = vsub.s32 %v952, %v1446
    %v1448 = vrot.slane %v1303, %v1447
    %v1449 = vsel %vm957, %v1448, %v1444
    %v1450 = vlaneseq
    %v1451 = vshrl.u32 %v1450, 7
    %v1452 = vsub.s32 %v959, %v1451
    %v1453 = vrot.slane %v1306, %v1452
    %v1454 = vsel %vm964, %v1453, %v1449
    %v1455 = vlaneseq
    %v1456 = vshrl.u32 %v1455, 7
    %v1457 = vsub.s32 %v966, %v1456
    %v1458 = vrot.slane %v1309, %v1457
    %v1459 = vsel %vm971, %v1458, %v1454
    %v1460 = vlaneseq
    %v1461 = vshrl.u32 %v1460, 7
    %v1462 = vsub.s32 %v973, %v1461
    %v1463 = vrot.slane %v1312, %v1462
    %v1464 = vsel %vm978, %v1463, %v1459
    %v1465 = vlaneseq
    %v1466 = vshrl.u32 %v1465, 7
    %v1467 = vsub.s32 %v980, %v1466
    %v1468 = vrot.slane %v1315, %v1467
    %v1469 = vsel %vm985, %v1468, %v1464
    %v1470 = vlaneseq
    %v1471 = vshrl.u32 %v1470, 7
    %v1472 = vsub.s32 %v987, %v1471
    %v1473 = vrot.slane %v1318, %v1472
    %v1474 = vsel %vm992, %v1473, %v1469
    %v1475 = vlaneseq
    %v1476 = vshrl.u32 %v1475, 7
    %v1477 = vsub.s32 %v994, %v1476
    %v1478 = vrot.slane %v1321, %v1477
    %v1479 = vsel %vm999, %v1478, %v1474
    %v1480 = vsel %vm1080, %v1479, %v1400
    %v1482 = vsel %vm1083, %v1480, 0.0
    %1483 = vadd.xlane.f32.xlu0 %v1482
    %v1484 = vpop.xlane.xlu0 %1483
    %v1485 = vrcp.pop %v1484
    %v1487 = vlaneseq
    %v1488 = vshrl.u32 %v1487, 7
    %v1489 = vsub.s32 0, %v1488
    %v1490 = vrot.slane %v1485, %v1489
    %v1491 = vlaneseq
    %v1492 = vshrl.u32 %v1491, 7
    %v1493 = vsub.s32 1, %v1492
    %v1494 = vrot.slane %v1485, %v1493
    %v1497 = vmul.f32 %v1131, %v1490
    %v1498 = vmul.f32 %v1133, %v1490
    %v1499 = vmul.f32 %v1135, %v1490
    %v1500 = vmul.f32 %v1137, %v1490
    %v1501 = vmul.f32 %v1139, %v1490
    %v1502 = vmul.f32 %v1141, %v1490
    %v1503 = vmul.f32 %v1143, %v1490
    %v1504 = vmul.f32 %v1145, %v1490
    %v1505 = vmul.f32 %v1147, %v1490
    %v1506 = vmul.f32 %v1149, %v1490
    %v1507 = vmul.f32 %v1151, %v1490
    %v1508 = vmul.f32 %v1153, %v1490
    %v1509 = vmul.f32 %v1155, %v1490
    %v1510 = vmul.f32 %v1157, %v1490
    %v1511 = vmul.f32 %v1159, %v1490
    %v1512 = vmul.f32 %v1161, %v1490
    %v1513 = vmul.f32 %v1163, %v1494
    %v1514 = vmul.f32 %v1165, %v1494
    %v1515 = vmul.f32 %v1167, %v1494
    %v1516 = vmul.f32 %v1169, %v1494
    %v1517 = vmul.f32 %v1171, %v1494
    %v1518 = vmul.f32 %v1173, %v1494
    %v1519 = vmul.f32 %v1175, %v1494
    %v1520 = vmul.f32 %v1177, %v1494
    %v1521 = vmul.f32 %v1179, %v1494
    %v1522 = vmul.f32 %v1181, %v1494
    %v1523 = vmul.f32 %v1183, %v1494
    %v1524 = vmul.f32 %v1185, %v1494
    %v1525 = vmul.f32 %v1187, %v1494
    %v1526 = vmul.f32 %v1189, %v1494
    %v1527 = vmul.f32 %v1191, %v1494
    %v1528 = vmul.f32 %v1193, %v1494
    %1561 = vset.pattern.permute.xlu0 0
    %1562 = vperm.xlu0 %1561, %v1497
    %v1563 = vpop.permute.xlu0 %1562
    %1564 = vset.pattern.permute.xlu0 0
    %1565 = vperm.xlu0 %1564, %v1498
    %v1566 = vpop.permute.xlu0 %1565
    %1567 = vset.pattern.permute.xlu0 0
    %1568 = vperm.xlu0 %1567, %v1499
    %v1569 = vpop.permute.xlu0 %1568
    %1570 = vset.pattern.permute.xlu0 0
    %1571 = vperm.xlu0 %1570, %v1500
    %v1572 = vpop.permute.xlu0 %1571
    %1573 = vset.pattern.permute.xlu0 0
    %1574 = vperm.xlu0 %1573, %v1501
    %v1575 = vpop.permute.xlu0 %1574
    %1576 = vset.pattern.permute.xlu0 0
    %1577 = vperm.xlu0 %1576, %v1502
    %v1578 = vpop.permute.xlu0 %1577
    %1579 = vset.pattern.permute.xlu0 0
    %1580 = vperm.xlu0 %1579, %v1503
    %v1581 = vpop.permute.xlu0 %1580
    %1582 = vset.pattern.permute.xlu0 0
    %1583 = vperm.xlu0 %1582, %v1504
    %v1584 = vpop.permute.xlu0 %1583
    %1585 = vset.pattern.permute.xlu0 0
    %1586 = vperm.xlu0 %1585, %v1505
    %v1587 = vpop.permute.xlu0 %1586
    %1588 = vset.pattern.permute.xlu0 0
    %1589 = vperm.xlu0 %1588, %v1506
    %v1590 = vpop.permute.xlu0 %1589
    %1591 = vset.pattern.permute.xlu0 0
    %1592 = vperm.xlu0 %1591, %v1507
    %v1593 = vpop.permute.xlu0 %1592
    %1594 = vset.pattern.permute.xlu0 0
    %1595 = vperm.xlu0 %1594, %v1508
    %v1596 = vpop.permute.xlu0 %1595
    %1597 = vset.pattern.permute.xlu0 0
    %1598 = vperm.xlu0 %1597, %v1509
    %v1599 = vpop.permute.xlu0 %1598
    %1600 = vset.pattern.permute.xlu0 0
    %1601 = vperm.xlu0 %1600, %v1510
    %v1602 = vpop.permute.xlu0 %1601
    %1603 = vset.pattern.permute.xlu0 0
    %1604 = vperm.xlu0 %1603, %v1511
    %v1605 = vpop.permute.xlu0 %1604
    %1606 = vset.pattern.permute.xlu0 0
    %1607 = vperm.xlu0 %1606, %v1512
    %v1608 = vpop.permute.xlu0 %1607
    %1609 = vset.pattern.permute.xlu0 0
    %1610 = vperm.xlu0 %1609, %v1513
    %v1611 = vpop.permute.xlu0 %1610
    %1612 = vset.pattern.permute.xlu0 0
    %1613 = vperm.xlu0 %1612, %v1514
    %v1614 = vpop.permute.xlu0 %1613
    %1615 = vset.pattern.permute.xlu0 0
    %1616 = vperm.xlu0 %1615, %v1515
    %v1617 = vpop.permute.xlu0 %1616
    %1618 = vset.pattern.permute.xlu0 0
    %1619 = vperm.xlu0 %1618, %v1516
    %v1620 = vpop.permute.xlu0 %1619
    %1621 = vset.pattern.permute.xlu0 0
    %1622 = vperm.xlu0 %1621, %v1517
    %v1623 = vpop.permute.xlu0 %1622
    %1624 = vset.pattern.permute.xlu0 0
    %1625 = vperm.xlu0 %1624, %v1518
    %v1626 = vpop.permute.xlu0 %1625
    %1627 = vset.pattern.permute.xlu0 0
    %1628 = vperm.xlu0 %1627, %v1519
    %v1629 = vpop.permute.xlu0 %1628
    %1630 = vset.pattern.permute.xlu0 0
    %1631 = vperm.xlu0 %1630, %v1520
    %v1632 = vpop.permute.xlu0 %1631
    %1633 = vset.pattern.permute.xlu0 0
    %1634 = vperm.xlu0 %1633, %v1521
    %v1635 = vpop.permute.xlu0 %1634
    %1636 = vset.pattern.permute.xlu0 0
    %1637 = vperm.xlu0 %1636, %v1522
    %v1638 = vpop.permute.xlu0 %1637
    %1639 = vset.pattern.permute.xlu0 0
    %1640 = vperm.xlu0 %1639, %v1523
    %v1641 = vpop.permute.xlu0 %1640
    %1642 = vset.pattern.permute.xlu0 0
    %1643 = vperm.xlu0 %1642, %v1524
    %v1644 = vpop.permute.xlu0 %1643
    %1645 = vset.pattern.permute.xlu0 0
    %1646 = vperm.xlu0 %1645, %v1525
    %v1647 = vpop.permute.xlu0 %1646
    %1648 = vset.pattern.permute.xlu0 0
    %1649 = vperm.xlu0 %1648, %v1526
    %v1650 = vpop.permute.xlu0 %1649
    %1651 = vset.pattern.permute.xlu0 0
    %1652 = vperm.xlu0 %1651, %v1527
    %v1653 = vpop.permute.xlu0 %1652
    %1654 = vset.pattern.permute.xlu0 0
    %1655 = vperm.xlu0 %1654, %v1528
    %v1656 = vpop.permute.xlu0 %1655
    %v1657 = vlaneseq
    %v1658 = vshrl.u32 %v1657, 7
    %v1659 = vsub.s32 %v891, %v1658
    %v1660 = vrot.slane %v1563, %v1659
    %v1661 = vlaneseq
    %v1662 = vshrl.u32 %v1661, 7
    %v1663 = vsub.s32 %v896, %v1662
    %v1664 = vrot.slane %v1566, %v1663
    %v1665 = vsel %vm901, %v1664, %v1660
    %v1666 = vlaneseq
    %v1667 = vshrl.u32 %v1666, 7
    %v1668 = vsub.s32 %v903, %v1667
    %v1669 = vrot.slane %v1569, %v1668
    %v1670 = vsel %vm908, %v1669, %v1665
    %v1671 = vlaneseq
    %v1672 = vshrl.u32 %v1671, 7
    %v1673 = vsub.s32 %v910, %v1672
    %v1674 = vrot.slane %v1572, %v1673
    %v1675 = vsel %vm915, %v1674, %v1670
    %v1676 = vlaneseq
    %v1677 = vshrl.u32 %v1676, 7
    %v1678 = vsub.s32 %v917, %v1677
    %v1679 = vrot.slane %v1575, %v1678
    %v1680 = vsel %vm922, %v1679, %v1675
    %v1681 = vlaneseq
    %v1682 = vshrl.u32 %v1681, 7
    %v1683 = vsub.s32 %v924, %v1682
    %v1684 = vrot.slane %v1578, %v1683
    %v1685 = vsel %vm929, %v1684, %v1680
    %v1686 = vlaneseq
    %v1687 = vshrl.u32 %v1686, 7
    %v1688 = vsub.s32 %v931, %v1687
    %v1689 = vrot.slane %v1581, %v1688
    %v1690 = vsel %vm936, %v1689, %v1685
    %v1691 = vlaneseq
    %v1692 = vshrl.u32 %v1691, 7
    %v1693 = vsub.s32 %v938, %v1692
    %v1694 = vrot.slane %v1584, %v1693
    %v1695 = vsel %vm943, %v1694, %v1690
    %v1696 = vlaneseq
    %v1697 = vshrl.u32 %v1696, 7
    %v1698 = vsub.s32 %v945, %v1697
    %v1699 = vrot.slane %v1587, %v1698
    %v1700 = vsel %vm950, %v1699, %v1695
    %v1701 = vlaneseq
    %v1702 = vshrl.u32 %v1701, 7
    %v1703 = vsub.s32 %v952, %v1702
    %v1704 = vrot.slane %v1590, %v1703
    %v1705 = vsel %vm957, %v1704, %v1700
    %v1706 = vlaneseq
    %v1707 = vshrl.u32 %v1706, 7
    %v1708 = vsub.s32 %v959, %v1707
    %v1709 = vrot.slane %v1593, %v1708
    %v1710 = vsel %vm964, %v1709, %v1705
    %v1711 = vlaneseq
    %v1712 = vshrl.u32 %v1711, 7
    %v1713 = vsub.s32 %v966, %v1712
    %v1714 = vrot.slane %v1596, %v1713
    %v1715 = vsel %vm971, %v1714, %v1710
    %v1716 = vlaneseq
    %v1717 = vshrl.u32 %v1716, 7
    %v1718 = vsub.s32 %v973, %v1717
    %v1719 = vrot.slane %v1599, %v1718
    %v1720 = vsel %vm978, %v1719, %v1715
    %v1721 = vlaneseq
    %v1722 = vshrl.u32 %v1721, 7
    %v1723 = vsub.s32 %v980, %v1722
    %v1724 = vrot.slane %v1602, %v1723
    %v1725 = vsel %vm985, %v1724, %v1720
    %v1726 = vlaneseq
    %v1727 = vshrl.u32 %v1726, 7
    %v1728 = vsub.s32 %v987, %v1727
    %v1729 = vrot.slane %v1605, %v1728
    %v1730 = vsel %vm992, %v1729, %v1725
    %v1731 = vlaneseq
    %v1732 = vshrl.u32 %v1731, 7
    %v1733 = vsub.s32 %v994, %v1732
    %v1734 = vrot.slane %v1608, %v1733
    %v1735 = vsel %vm999, %v1734, %v1730
    %v1736 = vlaneseq
    %v1737 = vshrl.u32 %v1736, 7
    %v1738 = vsub.s32 %v891, %v1737
    %v1739 = vrot.slane %v1611, %v1738
    %v1740 = vlaneseq
    %v1741 = vshrl.u32 %v1740, 7
    %v1742 = vsub.s32 %v896, %v1741
    %v1743 = vrot.slane %v1614, %v1742
    %v1744 = vsel %vm901, %v1743, %v1739
    %v1745 = vlaneseq
    %v1746 = vshrl.u32 %v1745, 7
    %v1747 = vsub.s32 %v903, %v1746
    %v1748 = vrot.slane %v1617, %v1747
    %v1749 = vsel %vm908, %v1748, %v1744
    %v1750 = vlaneseq
    %v1751 = vshrl.u32 %v1750, 7
    %v1752 = vsub.s32 %v910, %v1751
    %v1753 = vrot.slane %v1620, %v1752
    %v1754 = vsel %vm915, %v1753, %v1749
    %v1755 = vlaneseq
    %v1756 = vshrl.u32 %v1755, 7
    %v1757 = vsub.s32 %v917, %v1756
    %v1758 = vrot.slane %v1623, %v1757
    %v1759 = vsel %vm922, %v1758, %v1754
    %v1760 = vlaneseq
    %v1761 = vshrl.u32 %v1760, 7
    %v1762 = vsub.s32 %v924, %v1761
    %v1763 = vrot.slane %v1626, %v1762
    %v1764 = vsel %vm929, %v1763, %v1759
    %v1765 = vlaneseq
    %v1766 = vshrl.u32 %v1765, 7
    %v1767 = vsub.s32 %v931, %v1766
    %v1768 = vrot.slane %v1629, %v1767
    %v1769 = vsel %vm936, %v1768, %v1764
    %v1770 = vlaneseq
    %v1771 = vshrl.u32 %v1770, 7
    %v1772 = vsub.s32 %v938, %v1771
    %v1773 = vrot.slane %v1632, %v1772
    %v1774 = vsel %vm943, %v1773, %v1769
    %v1775 = vlaneseq
    %v1776 = vshrl.u32 %v1775, 7
    %v1777 = vsub.s32 %v945, %v1776
    %v1778 = vrot.slane %v1635, %v1777
    %v1779 = vsel %vm950, %v1778, %v1774
    %v1780 = vlaneseq
    %v1781 = vshrl.u32 %v1780, 7
    %v1782 = vsub.s32 %v952, %v1781
    %v1783 = vrot.slane %v1638, %v1782
    %v1784 = vsel %vm957, %v1783, %v1779
    %v1785 = vlaneseq
    %v1786 = vshrl.u32 %v1785, 7
    %v1787 = vsub.s32 %v959, %v1786
    %v1788 = vrot.slane %v1641, %v1787
    %v1789 = vsel %vm964, %v1788, %v1784
    %v1790 = vlaneseq
    %v1791 = vshrl.u32 %v1790, 7
    %v1792 = vsub.s32 %v966, %v1791
    %v1793 = vrot.slane %v1644, %v1792
    %v1794 = vsel %vm971, %v1793, %v1789
    %v1795 = vlaneseq
    %v1796 = vshrl.u32 %v1795, 7
    %v1797 = vsub.s32 %v973, %v1796
    %v1798 = vrot.slane %v1647, %v1797
    %v1799 = vsel %vm978, %v1798, %v1794
    %v1800 = vlaneseq
    %v1801 = vshrl.u32 %v1800, 7
    %v1802 = vsub.s32 %v980, %v1801
    %v1803 = vrot.slane %v1650, %v1802
    %v1804 = vsel %vm985, %v1803, %v1799
    %v1805 = vlaneseq
    %v1806 = vshrl.u32 %v1805, 7
    %v1807 = vsub.s32 %v987, %v1806
    %v1808 = vrot.slane %v1653, %v1807
    %v1809 = vsel %vm992, %v1808, %v1804
    %v1810 = vlaneseq
    %v1811 = vshrl.u32 %v1810, 7
    %v1812 = vsub.s32 %v994, %v1811
    %v1813 = vrot.slane %v1656, %v1812
    %v1814 = vsel %vm999, %v1813, %v1809
    %v1815 = vsel %vm1080, %v1814, %v1735
    %1817 = vst [vmem:[#allocation2] sm:$0x3] %v1815
    // Predicated region
    $region22: #{tpu_custom_call.1} parent=1 // pred_check
      _
    $region23: #{tpu_custom_call.1} parent=1 // pred_check_branch
      %1819 = sbr.rel (0) target = $region25
    $region24: #{tpu_custom_call.1} parent=1 // pred_region
      %s1821 = ssub.s32 32, 32
      %1822 = vsyncadd [#allocation3], %s1821
      %s1824 = sshll.u32 [#allocation2], 4
      %s1825 = int_to_ptr.vmem [resolvable:$true] %s1824
      %1827 = dma.vmem_to_hbm [thread:$0]  %s1825, 32, %s5, [#allocation3]
    $region25: #{tpu_custom_call.1} parent=1 // pred_fallthru
      _
    // Predicated region
    $region26: #{tpu_custom_call.1} parent=1 // pred_check
      _
    $region27: #{tpu_custom_call.1} parent=1 // pred_check_branch
      %1829 = sbr.rel (0) target = $region29
    $region28: #{tpu_custom_call.1} parent=1 // pred_region
      %1830 = dma.done [#allocation3], 32
    $region29: #{tpu_custom_call.1} parent=1 // pred_fallthru
      _
    %1831 = vsyncpa [#allocation3], 1

</llo_original>
